<compile_context>
chip_gen: v7x
topology: tpu7x:2x2x1
jax: 0.10.0
libtpu: 0.0.40
codegen_flags: <defaults>
</compile_context>

<pallas_src>
import functools

import jax
import jax.numpy as jnp
from jax.experimental import pallas as pl
from jax.experimental.pallas import tpu as pltpu


def fold_bn(gamma, beta, mean, var, eps=1e-5):
    """Fold BatchNorm2d (eval mode) into per-channel scale/bias."""
    scale = gamma / jnp.sqrt(var + eps)
    bias = beta - mean * scale
    return scale, bias


def band_weights(w_hwio, W, dtype=jnp.float32):
    """Fold the kw taps (and the zero column padding) of a 3x3 stride-1 conv
    into banded matrices B of shape (3, W*Cin, W*Cout):

        B[kh, wi*Cin + ci, wo*Cout + co] = w[kh, kw, ci, co]  iff  wi == wo + kw - 1

    so that conv(x)[h, wo*Cout + co] = sum_kh (x[h+kh-1, :] @ B[kh])[wo*Cout + co].
    """
    KH, KW, Cin, Cout = w_hwio.shape
    assert (KH, KW) == (3, 3), w_hwio.shape
    wi = jnp.arange(W)[None, :, None]          # input column
    wo = jnp.arange(W)[None, None, :]          # output column
    kw = jnp.arange(KW)[:, None, None]         # kw tap
    sel = (wi == wo + kw - 1).astype(w_hwio.dtype)          # (3, W, W)
    B = jnp.einsum("kio,hkcd->hicod", sel, w_hwio)          # (3, W, Cin, W, Cout)
    return B.reshape(3, W * Cin, W * Cout).astype(dtype)


def _basic_block_kernel(x_ref, sh_ref, w1_ref, s1_ref, b1_ref,
                        w2_ref, s2_ref, b2_ref, o_ref, *, mm_dtype):
    """Fused BasicBlock on one image; all tiles are lane-packed (H, W*C)."""

    def conv3x3(x, w_ref):
        # x: (H, W*Cin) f32;  w_ref: (3, W*Cin, W*Cout) banded weights.
        xm = x.astype(mm_dtype)
        z0 = jnp.dot(xm, w_ref[0], preferred_element_type=jnp.float32)
        z1 = jnp.dot(xm, w_ref[1], preferred_element_type=jnp.float32)
        z2 = jnp.dot(xm, w_ref[2], preferred_element_type=jnp.float32)
        # kh=0 reads input row h-1, kh=2 reads row h+1: apply the +/-1 row
        # shift (zero fill at the borders) as tiny (H,H) shift-matrix matmuls
        # on the otherwise-idle MXU — avoids sublane relayout copies.
        dn = jnp.dot(sh_ref[0], z0, preferred_element_type=jnp.float32)
        up = jnp.dot(sh_ref[1], z2, preferred_element_type=jnp.float32)
        return z1 + dn + up

    x = x_ref[...].astype(jnp.float32)                        # (H, W*C)
    h = conv3x3(x, w1_ref)
    h = jnp.maximum(h * s1_ref[...] + b1_ref[...], 0.0)       # BN1 (folded) + ReLU
    h = conv3x3(h, w2_ref)
    out = h * s2_ref[...] + b2_ref[...] + x                   # BN2 (folded) + residual
    o_ref[...] = out.astype(o_ref.dtype)


def basic_block_forward(x_nchw, p, *, matmul_dtype=jnp.float32):
    """BasicBlock.forward (NCHW in / NCHW out), one fused Pallas kernel."""
    N, C, H, W = x_nchw.shape
    WC = W * C

    # NCHW -> lane-packed (N, H, W*C).  (If the surrounding model were kept
    # NHWC end-to-end these two wrapper transposes would disappear.)
    x = jnp.transpose(x_nchw, (0, 2, 3, 1)).reshape(N, H, WC).astype(jnp.float32)

    s1, b1 = fold_bn(p["bn1_gamma"], p["bn1_beta"], p["bn1_mean"], p["bn1_var"])
    s2, b2 = fold_bn(p["bn2_gamma"], p["bn2_beta"], p["bn2_mean"], p["bn2_var"])
    # Pre-tile BN scale/bias to the lane-packed (1, W*C) layout (hoisted once).
    s1p = jnp.tile(s1, W).reshape(1, WC).astype(jnp.float32)
    b1p = jnp.tile(b1, W).reshape(1, WC).astype(jnp.float32)
    s2p = jnp.tile(s2, W).reshape(1, WC).astype(jnp.float32)
    b2p = jnp.tile(b2, W).reshape(1, WC).astype(jnp.float32)

    # Banded conv weights (kw taps + zero column padding folded in).
    B1 = band_weights(p["w1"], W, matmul_dtype)        # (3, W*C, W*C)
    B2 = band_weights(p["w2"], W, matmul_dtype)

    # Row-shift matrices for the kh=0 / kh=2 taps (zero fill at borders).
    ih = jnp.arange(H)
    shift_dn = (ih[:, None] == ih[None, :] + 1).astype(jnp.float32)   # picks row h-1
    shift_up = (ih[:, None] + 1 == ih[None, :]).astype(jnp.float32)   # picks row h+1
    shifts = jnp.stack([shift_dn, shift_up])                          # (2, H, H)

    kernel = functools.partial(_basic_block_kernel, mm_dtype=matmul_dtype)

    img_spec = pl.BlockSpec((None, H, WC), lambda n: (n, 0, 0))
    sh_spec = pl.BlockSpec((2, H, H), lambda n: (0, 0, 0))
    wgt_spec = pl.BlockSpec((3, WC, WC), lambda n: (0, 0, 0))
    vec_spec = pl.BlockSpec((1, WC), lambda n: (0, 0))

    out = pl.pallas_call(
        kernel,
        out_shape=jax.ShapeDtypeStruct((N, H, WC), jnp.float32),
        grid=(N,),
        in_specs=[img_spec, sh_spec,
                  wgt_spec, vec_spec, vec_spec,
                  wgt_spec, vec_spec, vec_spec],
        out_specs=img_spec,
        compiler_params=pltpu.CompilerParams(
            dimension_semantics=("parallel",)),
    )(x, shifts, B1, s1p, b1p, B2, s2p, b2p)

    return jnp.transpose(out.reshape(N, H, W, C), (0, 3, 1, 2))


def reference_forward(x_nchw, p):
    """Pure-JAX reference (lax.conv) for correctness checking."""
    x = jnp.transpose(x_nchw, (0, 2, 3, 1))

    def conv(z, w):
        return jax.lax.conv_general_dilated(
            z, w, (1, 1), ((1, 1), (1, 1)),
            dimension_numbers=("NHWC", "HWIO", "NHWC"))

    s1, b1 = fold_bn(p["bn1_gamma"], p["bn1_beta"], p["bn1_mean"], p["bn1_var"])
    out = jnp.maximum(conv(x, p["w1"]) * s1 + b1, 0.0)
    s2, b2 = fold_bn(p["bn2_gamma"], p["bn2_beta"], p["bn2_mean"], p["bn2_var"])
    out = conv(out, p["w2"]) * s2 + b2 + x
    return jnp.transpose(out, (0, 3, 1, 2))


if __name__ == "__main__":
    key = jax.random.PRNGKey(0)
    N, C, H, W = 2, 8, 16, 16                      # inplanes == planes, stride=1
    ks = jax.random.split(key, 11)

    x = jax.random.normal(ks[0], (N, C, H, W), jnp.float32)
    params = dict(
        # conv weights in HWIO (3, 3, Cin, Cout), no bias (matches convbn)
        w1=0.1 * jax.random.normal(ks[1], (3, 3, C, C), jnp.float32),
        w2=0.1 * jax.random.normal(ks[2], (3, 3, C, C), jnp.float32),
        bn1_gamma=1.0 + 0.1 * jax.random.normal(ks[3], (C,), jnp.float32),
        bn1_beta=0.1 * jax.random.normal(ks[4], (C,), jnp.float32),
        bn1_mean=0.1 * jax.random.normal(ks[5], (C,), jnp.float32),
        bn1_var=1.0 + 0.2 * jax.random.uniform(ks[6], (C,), jnp.float32),
        bn2_gamma=1.0 + 0.1 * jax.random.normal(ks[7], (C,), jnp.float32),
        bn2_beta=0.1 * jax.random.normal(ks[8], (C,), jnp.float32),
        bn2_mean=0.1 * jax.random.normal(ks[9], (C,), jnp.float32),
        bn2_var=1.0 + 0.2 * jax.random.uniform(ks[10], (C,), jnp.float32),
    )

    out = jax.block_until_ready(basic_block_forward(x, params))
    ref = jax.block_until_ready(reference_forward(x, params))

    assert out.shape == (N, C, H, W), out.shape
    max_err = float(jnp.max(jnp.abs(out - ref)))
    assert jnp.allclose(out, ref, atol=1e-4, rtol=1e-4), f"max_err={max_err}"
    print("KERNEL_OK")
</pallas_src>

<mosaic_0001>
module attributes {stable_mosaic.version = 11 : i64} {
  func.func @_basic_block_kernel(%arg0: i32, %arg1: memref<1x16x128xf32, #tpu.memory_space<vmem>>, %arg2: memref<2x16x16xf32, #tpu.memory_space<vmem>>, %arg3: memref<3x128x128xf32, #tpu.memory_space<vmem>>, %arg4: memref<1x128xf32, #tpu.memory_space<vmem>>, %arg5: memref<1x128xf32, #tpu.memory_space<vmem>>, %arg6: memref<3x128x128xf32, #tpu.memory_space<vmem>>, %arg7: memref<1x128xf32, #tpu.memory_space<vmem>>, %arg8: memref<1x128xf32, #tpu.memory_space<vmem>>, %arg9: memref<1x16x128xf32, #tpu.memory_space<vmem>>) attributes {dimension_semantics = [#tpu.dimension_semantics<parallel>], iteration_bounds = array<i64: 2>, scalar_prefetch = 0 : i64, scratch_operands = 0 : i64, tpu.core_type = #tpu.core_type<tc>, window_params = [{transform_indices = @transform_0, window_bounds = array<i64: 1, 16, 128>}, {pipeline_mode = #tpu.pipeline_mode<synchronous>, transform_indices = @transform_1, window_bounds = array<i64: 2, 16, 16>}, {pipeline_mode = #tpu.pipeline_mode<synchronous>, transform_indices = @transform_2, window_bounds = array<i64: 3, 128, 128>}, {pipeline_mode = #tpu.pipeline_mode<synchronous>, transform_indices = @transform_3, window_bounds = array<i64: 1, 128>}, {pipeline_mode = #tpu.pipeline_mode<synchronous>, transform_indices = @transform_4, window_bounds = array<i64: 1, 128>}, {pipeline_mode = #tpu.pipeline_mode<synchronous>, transform_indices = @transform_5, window_bounds = array<i64: 3, 128, 128>}, {pipeline_mode = #tpu.pipeline_mode<synchronous>, transform_indices = @transform_6, window_bounds = array<i64: 1, 128>}, {pipeline_mode = #tpu.pipeline_mode<synchronous>, transform_indices = @transform_7, window_bounds = array<i64: 1, 128>}, {transform_indices = @transform_8, window_bounds = array<i64: 1, 16, 128>}]} {
    %c0 = arith.constant 0 : index
    %c0_0 = arith.constant 0 : index
    %c0_1 = arith.constant 0 : index
    %0 = vector.load %arg1[%c0, %c0_0, %c0_1] : memref<1x16x128xf32, #tpu.memory_space<vmem>>, vector<1x16x128xf32>
    %1 = vector.shape_cast %0 : vector<1x16x128xf32> to vector<16x128xf32>
    %c0_2 = arith.constant 0 : index
    %c0_3 = arith.constant 0 : index
    %c0_4 = arith.constant 0 : index
    %2 = vector.load %arg3[%c0_2, %c0_3, %c0_4] : memref<3x128x128xf32, #tpu.memory_space<vmem>>, vector<1x128x128xf32>
    %3 = vector.shape_cast %2 : vector<1x128x128xf32> to vector<128x128xf32>
    %cst = arith.constant dense<0.000000e+00> : vector<16x128xf32>
    %4 = tpu.matmul %1, %3, %cst {dimension_numbers = #tpu.dot_dimension_numbers<[1], [0], [0], [1], [0, 0, 1, 1], [], []>} : vector<16x128xf32>, vector<128x128xf32>, vector<16x128xf32> -> vector<16x128xf32>
    %c1 = arith.constant 1 : index
    %c0_5 = arith.constant 0 : index
    %c0_6 = arith.constant 0 : index
    %5 = vector.load %arg3[%c1, %c0_5, %c0_6] : memref<3x128x128xf32, #tpu.memory_space<vmem>>, vector<1x128x128xf32>
    %6 = vector.shape_cast %5 : vector<1x128x128xf32> to vector<128x128xf32>
    %cst_7 = arith.constant dense<0.000000e+00> : vector<16x128xf32>
    %7 = tpu.matmul %1, %6, %cst_7 {dimension_numbers = #tpu.dot_dimension_numbers<[1], [0], [0], [1], [0, 0, 1, 1], [], []>} : vector<16x128xf32>, vector<128x128xf32>, vector<16x128xf32> -> vector<16x128xf32>
    %c2 = arith.constant 2 : index
    %c0_8 = arith.constant 0 : index
    %c0_9 = arith.constant 0 : index
    %8 = vector.load %arg3[%c2, %c0_8, %c0_9] : memref<3x128x128xf32, #tpu.memory_space<vmem>>, vector<1x128x128xf32>
    %9 = vector.shape_cast %8 : vector<1x128x128xf32> to vector<128x128xf32>
    %cst_10 = arith.constant dense<0.000000e+00> : vector<16x128xf32>
    %10 = tpu.matmul %1, %9, %cst_10 {dimension_numbers = #tpu.dot_dimension_numbers<[1], [0], [0], [1], [0, 0, 1, 1], [], []>} : vector<16x128xf32>, vector<128x128xf32>, vector<16x128xf32> -> vector<16x128xf32>
    %c0_11 = arith.constant 0 : index
    %c0_12 = arith.constant 0 : index
    %c0_13 = arith.constant 0 : index
    %11 = vector.load %arg2[%c0_11, %c0_12, %c0_13] : memref<2x16x16xf32, #tpu.memory_space<vmem>>, vector<1x16x16xf32>
    %12 = vector.shape_cast %11 : vector<1x16x16xf32> to vector<16x16xf32>
    %cst_14 = arith.constant dense<0.000000e+00> : vector<16x128xf32>
    %13 = tpu.matmul %12, %4, %cst_14 {dimension_numbers = #tpu.dot_dimension_numbers<[1], [0], [0], [1], [0, 0, 1, 1], [], []>} : vector<16x16xf32>, vector<16x128xf32>, vector<16x128xf32> -> vector<16x128xf32>
    %c1_15 = arith.constant 1 : index
    %c0_16 = arith.constant 0 : index
    %c0_17 = arith.constant 0 : index
    %14 = vector.load %arg2[%c1_15, %c0_16, %c0_17] : memref<2x16x16xf32, #tpu.memory_space<vmem>>, vector<1x16x16xf32>
    %15 = vector.shape_cast %14 : vector<1x16x16xf32> to vector<16x16xf32>
    %cst_18 = arith.constant dense<0.000000e+00> : vector<16x128xf32>
    %16 = tpu.matmul %15, %10, %cst_18 {dimension_numbers = #tpu.dot_dimension_numbers<[1], [0], [0], [1], [0, 0, 1, 1], [], []>} : vector<16x16xf32>, vector<16x128xf32>, vector<16x128xf32> -> vector<16x128xf32>
    %17 = arith.addf %7, %13 : vector<16x128xf32>
    %18 = arith.addf %17, %16 : vector<16x128xf32>
    %c0_19 = arith.constant 0 : index
    %c0_20 = arith.constant 0 : index
    %19 = vector.load %arg4[%c0_19, %c0_20] : memref<1x128xf32, #tpu.memory_space<vmem>>, vector<1x128xf32>
    %20 = vector.broadcast %19 : vector<1x128xf32> to vector<16x128xf32>
    %21 = arith.mulf %18, %20 : vector<16x128xf32>
    %c0_21 = arith.constant 0 : index
    %c0_22 = arith.constant 0 : index
    %22 = vector.load %arg5[%c0_21, %c0_22] : memref<1x128xf32, #tpu.memory_space<vmem>>, vector<1x128xf32>
    %23 = vector.broadcast %22 : vector<1x128xf32> to vector<16x128xf32>
    %24 = arith.addf %21, %23 : vector<16x128xf32>
    %cst_23 = arith.constant 0.000000e+00 : f32
    %25 = vector.broadcast %cst_23 : f32 to vector<16x128xf32>
    %26 = arith.maximumf %24, %25 : vector<16x128xf32>
    %c0_24 = arith.constant 0 : index
    %c0_25 = arith.constant 0 : index
    %c0_26 = arith.constant 0 : index
    %27 = vector.load %arg6[%c0_24, %c0_25, %c0_26] : memref<3x128x128xf32, #tpu.memory_space<vmem>>, vector<1x128x128xf32>
    %28 = vector.shape_cast %27 : vector<1x128x128xf32> to vector<128x128xf32>
    %cst_27 = arith.constant dense<0.000000e+00> : vector<16x128xf32>
    %29 = tpu.matmul %26, %28, %cst_27 {dimension_numbers = #tpu.dot_dimension_numbers<[1], [0], [0], [1], [0, 0, 1, 1], [], []>} : vector<16x128xf32>, vector<128x128xf32>, vector<16x128xf32> -> vector<16x128xf32>
    %c1_28 = arith.constant 1 : index
    %c0_29 = arith.constant 0 : index
    %c0_30 = arith.constant 0 : index
    %30 = vector.load %arg6[%c1_28, %c0_29, %c0_30] : memref<3x128x128xf32, #tpu.memory_space<vmem>>, vector<1x128x128xf32>
    %31 = vector.shape_cast %30 : vector<1x128x128xf32> to vector<128x128xf32>
    %cst_31 = arith.constant dense<0.000000e+00> : vector<16x128xf32>
    %32 = tpu.matmul %26, %31, %cst_31 {dimension_numbers = #tpu.dot_dimension_numbers<[1], [0], [0], [1], [0, 0, 1, 1], [], []>} : vector<16x128xf32>, vector<128x128xf32>, vector<16x128xf32> -> vector<16x128xf32>
    %c2_32 = arith.constant 2 : index
    %c0_33 = arith.constant 0 : index
    %c0_34 = arith.constant 0 : index
    %33 = vector.load %arg6[%c2_32, %c0_33, %c0_34] : memref<3x128x128xf32, #tpu.memory_space<vmem>>, vector<1x128x128xf32>
    %34 = vector.shape_cast %33 : vector<1x128x128xf32> to vector<128x128xf32>
    %cst_35 = arith.constant dense<0.000000e+00> : vector<16x128xf32>
    %35 = tpu.matmul %26, %34, %cst_35 {dimension_numbers = #tpu.dot_dimension_numbers<[1], [0], [0], [1], [0, 0, 1, 1], [], []>} : vector<16x128xf32>, vector<128x128xf32>, vector<16x128xf32> -> vector<16x128xf32>
    %c0_36 = arith.constant 0 : index
    %c0_37 = arith.constant 0 : index
    %c0_38 = arith.constant 0 : index
    %36 = vector.load %arg2[%c0_36, %c0_37, %c0_38] : memref<2x16x16xf32, #tpu.memory_space<vmem>>, vector<1x16x16xf32>
    %37 = vector.shape_cast %36 : vector<1x16x16xf32> to vector<16x16xf32>
    %cst_39 = arith.constant dense<0.000000e+00> : vector<16x128xf32>
    %38 = tpu.matmul %37, %29, %cst_39 {dimension_numbers = #tpu.dot_dimension_numbers<[1], [0], [0], [1], [0, 0, 1, 1], [], []>} : vector<16x16xf32>, vector<16x128xf32>, vector<16x128xf32> -> vector<16x128xf32>
    %c1_40 = arith.constant 1 : index
    %c0_41 = arith.constant 0 : index
    %c0_42 = arith.constant 0 : index
    %39 = vector.load %arg2[%c1_40, %c0_41, %c0_42] : memref<2x16x16xf32, #tpu.memory_space<vmem>>, vector<1x16x16xf32>
    %40 = vector.shape_cast %39 : vector<1x16x16xf32> to vector<16x16xf32>
    %cst_43 = arith.constant dense<0.000000e+00> : vector<16x128xf32>
    %41 = tpu.matmul %40, %35, %cst_43 {dimension_numbers = #tpu.dot_dimension_numbers<[1], [0], [0], [1], [0, 0, 1, 1], [], []>} : vector<16x16xf32>, vector<16x128xf32>, vector<16x128xf32> -> vector<16x128xf32>
    %42 = arith.addf %32, %38 : vector<16x128xf32>
    %43 = arith.addf %42, %41 : vector<16x128xf32>
    %c0_44 = arith.constant 0 : index
    %c0_45 = arith.constant 0 : index
    %44 = vector.load %arg7[%c0_44, %c0_45] : memref<1x128xf32, #tpu.memory_space<vmem>>, vector<1x128xf32>
    %45 = vector.broadcast %44 : vector<1x128xf32> to vector<16x128xf32>
    %46 = arith.mulf %43, %45 : vector<16x128xf32>
    %c0_46 = arith.constant 0 : index
    %c0_47 = arith.constant 0 : index
    %47 = vector.load %arg8[%c0_46, %c0_47] : memref<1x128xf32, #tpu.memory_space<vmem>>, vector<1x128xf32>
    %48 = vector.broadcast %47 : vector<1x128xf32> to vector<16x128xf32>
    %49 = arith.addf %46, %48 : vector<16x128xf32>
    %50 = arith.addf %49, %1 : vector<16x128xf32>
    %c0_48 = arith.constant 0 : index
    %c0_49 = arith.constant 0 : index
    %c0_50 = arith.constant 0 : index
    %51 = vector.load %arg9[%c0_48, %c0_49, %c0_50] : memref<1x16x128xf32, #tpu.memory_space<vmem>>, vector<1x16x128xf32>
    %52 = vector.shape_cast %51 : vector<1x16x128xf32> to vector<16x128xf32>
    %53 = vector.shape_cast %50 : vector<16x128xf32> to vector<1x16x128xf32>
    tpu.vector_store %arg9[%c0_48, %c0_49, %c0_50], %53 {strides = array<i32>} : memref<1x16x128xf32, #tpu.memory_space<vmem>>, vector<1x16x128xf32>,
    return
  }
  func.func @transform_0(%arg0: i32) -> (i32, i32, i32) {
    %c0_i32 = arith.constant 0 : i32
    %c0_i32_0 = arith.constant 0 : i32
    %c0_i32_1 = arith.constant 0 : i32
    return %arg0, %c0_i32, %c0_i32_0 : i32, i32, i32
  }
  func.func @transform_1(%arg0: i32) -> (i32, i32, i32) {
    %c0_i32 = arith.constant 0 : i32
    %c0_i32_0 = arith.constant 0 : i32
    %c0_i32_1 = arith.constant 0 : i32
    %c0_i32_2 = arith.constant 0 : i32
    return %c0_i32, %c0_i32_0, %c0_i32_1 : i32, i32, i32
  }
  func.func @transform_2(%arg0: i32) -> (i32, i32, i32) {
    %c0_i32 = arith.constant 0 : i32
    %c0_i32_0 = arith.constant 0 : i32
    %c0_i32_1 = arith.constant 0 : i32
    %c0_i32_2 = arith.constant 0 : i32
    return %c0_i32, %c0_i32_0, %c0_i32_1 : i32, i32, i32
  }
  func.func @transform_3(%arg0: i32) -> (i32, i32) {
    %c0_i32 = arith.constant 0 : i32
    %c0_i32_0 = arith.constant 0 : i32
    %c0_i32_1 = arith.constant 0 : i32
    return %c0_i32, %c0_i32_0 : i32, i32
  }
  func.func @transform_4(%arg0: i32) -> (i32, i32) {
    %c0_i32 = arith.constant 0 : i32
    %c0_i32_0 = arith.constant 0 : i32
    %c0_i32_1 = arith.constant 0 : i32
    return %c0_i32, %c0_i32_0 : i32, i32
  }
  func.func @transform_5(%arg0: i32) -> (i32, i32, i32) {
    %c0_i32 = arith.constant 0 : i32
    %c0_i32_0 = arith.constant 0 : i32
    %c0_i32_1 = arith.constant 0 : i32
    %c0_i32_2 = arith.constant 0 : i32
    return %c0_i32, %c0_i32_0, %c0_i32_1 : i32, i32, i32
  }
  func.func @transform_6(%arg0: i32) -> (i32, i32) {
    %c0_i32 = arith.constant 0 : i32
    %c0_i32_0 = arith.constant 0 : i32
    %c0_i32_1 = arith.constant 0 : i32
    return %c0_i32, %c0_i32_0 : i32, i32
  }
  func.func @transform_7(%arg0: i32) -> (i32, i32) {
    %c0_i32 = arith.constant 0 : i32
    %c0_i32_0 = arith.constant 0 : i32
    %c0_i32_1 = arith.constant 0 : i32
    return %c0_i32, %c0_i32_0 : i32, i32
  }
  func.func @transform_8(%arg0: i32) -> (i32, i32, i32) {
    %c0_i32 = arith.constant 0 : i32
    %c0_i32_0 = arith.constant 0 : i32
    %c0_i32_1 = arith.constant 0 : i32
    return %arg0, %c0_i32, %c0_i32_0 : i32, i32, i32
  }
}

</mosaic_0001>

<llo_original>
// kernel: tpu_custom_call.1
$region0: #{tpu_custom_call.1}
  #allocation0 [shape = 'u32[]', space=smem, size = 0x4, offset = 0x4, fixed_abs, tag = 'smem constant byte address 0x4 - core index']
  #allocation1 [shape = 'u32[144,128]{1,0:T(1,128)}', space=vmem, size = 0x12000, scoped, tag = 'internal scratch']
  %s0 = inlined_call_operand.hbm [shape: f32[2,16,128], index: 0, kind: input, shape index: {}]
  %s1 = inlined_call_operand.hbm [shape: f32[2,16,16], index: 1, kind: input, shape index: {}]
  %s2 = inlined_call_operand.hbm [shape: f32[3,128,128], index: 2, kind: input, shape index: {}]
  %s3 = inlined_call_operand.vmem [shape: f32[1,128], index: 3, kind: input, shape index: {}]
  %s4 = inlined_call_operand.vmem [shape: f32[1,128], index: 4, kind: input, shape index: {}]
  %s5 = inlined_call_operand.hbm [shape: f32[3,128,128], index: 5, kind: input, shape index: {}]
  %s6 = inlined_call_operand.vmem [shape: f32[1,128], index: 6, kind: input, shape index: {}]
  %s7 = inlined_call_operand.vmem [shape: f32[1,128], index: 7, kind: input, shape index: {}]
  %s8 = inlined_call_operand.hbm [shape: f32[2,16,128], index: 8, kind: output, shape index: {}]
  %s9 = sld [smem:[#allocation0]]
  $region81: #{tpu_custom_call.1} parent=0
    _
  %s11 = ssub.s32 1, %s9
  %s12 = scalar_select 0, %s11, %s9
  $region1: #{tpu_custom_call.1} parent=0
    #allocation2 [shape = 'u8[16384]{0}', space=vmem, size = 0x4000, scoped, tag = 'input window, operand 0']
    #allocation3 [shape = 's32[2]{0}', space=sflag, size = 0x8, scoped, tag = 'scoped memory for tpu_custom_call.1']
    #allocation4 [shape = 's32[2]{0}', space=sflag, size = 0x8, scoped, tag = 'scoped memory for tpu_custom_call.1']
    #allocation5 [shape = 'u8[16384]{0}', space=vmem, size = 0x4000, scoped, tag = 'input window, operand 1, single buffered']
    #allocation6 [shape = 's32[1]{0}', space=sflag, size = 0x4, scoped, tag = 'scoped memory for tpu_custom_call.1']
    #allocation7 [shape = 'u8[196608]{0}', space=vmem, size = 0x30000, scoped, tag = 'input window, operand 2, single buffered']
    #allocation8 [shape = 'u8[196608]{0}', space=vmem, size = 0x30000, scoped, tag = 'input window, operand 5, single buffered']
    #allocation9 [shape = 's32[1]{0}', space=sflag, size = 0x4, scoped, tag = 'scoped memory for tpu_custom_call.1']
    #allocation10 [shape = 'u8[16384]{0}', space=vmem, size = 0x4000, scoped, tag = 'output window, operand 0']
    %13 = vsyncpa [#allocation3], 0
    %s14 = scalar_lea.sflag [#allocation3], 1
    %15 = vsyncpa %s14, 0
    %16 = vsyncpa [#allocation6], 0
    %17 = vsyncpa [#allocation9], 0
    %18 = vsyncpa [#allocation4], 0
    %s19 = scalar_lea.sflag [#allocation4], 1
    %20 = vsyncpa %s19, 0
    loop: start=0, step=1, limit=4
    $region2: #{tpu_custom_call.1} parent=1 // loop_pre_header
      _
    $region3: #{tpu_custom_call.1} parent=1 // loop_header
      %s22 = sphi 0, %s26
      %p23 = scmp.ge.s32.totalorder %s22, 4
      %s32 = sphi 0, %s34
      %s35 = sphi 0, %s32
      %s36 = sphi 0, %s35
      %s52 = sphi 0, %s36
      %s56 = sphi 0, %s56
      %s58 = sphi 0, %s56
      %s59 = sphi 0, %s58
      %s73 = sphi 0, %s59
      %s77 = sphi 0, %s77
      %s79 = sphi 0, %s77
      %s80 = sphi 0, %s79
      %s94 = sphi 0, %s80
      %s98 = sphi 0, %s98
      %s100 = sphi 0, %s98
      %s101 = sphi 0, %s100
      %s115 = sphi 0, %s101
      %s119 = sphi 0, %s119
      %s121 = sphi 0, %s119
      %s122 = sphi 0, %s121
      %s136 = sphi 0, %s122
      %s140 = sphi 0, %s140
      %s142 = sphi 0, %s140
      %s143 = sphi 0, %s142
      %s157 = sphi 0, %s143
      %s161 = sphi 0, %s161
      %s163 = sphi 0, %s161
      %s164 = sphi 0, %s163
      %s178 = sphi 0, %s164
      %s182 = sphi 0, %s182
      %s184 = sphi 0, %s182
      %s185 = sphi 0, %s184
      %s199 = sphi 0, %s185
      %s205 = sphi 0, %s207
      %s208 = sphi 0, %s205
      %s209 = sphi 0, %s208
      %s225 = sphi 0, %s209
    $region4: #{tpu_custom_call.1} parent=1 // loop_header_branch
      %25 = sbr.rel (%p23) target = $region8
    $region5: #{tpu_custom_call.1} parent=1 // loop_body
      %s27 = ssub.s32 %s22, 1
      %s28 = ssub.s32 %s22, 2
      %s29 = sadd.s32 %s22, 1
      %s30 = ssub.s32 %s22, %s29
      %p31 = scmp.eq.s32.totalorder %s30, 0
      %s33 = sadd.s32 %s32, 1
      %s34 = scalar_select %p31, %s32, %s33
      %p37 = pneg %p31
      %p38 = scmp.eq.s32.totalorder %s22, 1
      %p39 = por %p37, %p38
      %p40 = scmp.ne.s32.totalorder %s32, %s35
      %p41 = scmp.eq.s32.totalorder %s22, 0
      %p42 = por %p40, %p41
      %p43 = scmp.ne.s32.totalorder %s32, %s35
      %p44 = scmp.eq.s32.totalorder %s27, 1
      %p45 = por %p43, %p44
      %p46 = scmp.ne.s32.totalorder %s35, %s36
      %p47 = scmp.eq.s32.totalorder %s27, 0
      %p48 = por %p46, %p47
      %p49 = scmp.ne.s32.totalorder %s35, %s36
      %p50 = scmp.eq.s32.totalorder %s28, 1
      %p51 = por %p49, %p50
      %p53 = scmp.ne.s32.totalorder %s36, %s52
      %p54 = scmp.eq.s32.totalorder %s28, 0
      %p55 = por %p53, %p54
      %s57 = sadd.s32 %s56, 1
      %p60 = scmp.eq.s32.totalorder %s22, 1
      %p61 = scmp.ne.s32.totalorder %s56, %s58
      %p62 = scmp.eq.s32.totalorder %s22, 0
      %p63 = por %p61, %p62
      %p64 = scmp.ne.s32.totalorder %s56, %s58
      %p65 = scmp.eq.s32.totalorder %s27, 1
      %p66 = por %p64, %p65
      %p67 = scmp.ne.s32.totalorder %s58, %s59
      %p68 = scmp.eq.s32.totalorder %s27, 0
      %p69 = por %p67, %p68
      %p70 = scmp.ne.s32.totalorder %s58, %s59
      %p71 = scmp.eq.s32.totalorder %s28, 1
      %p72 = por %p70, %p71
      %p74 = scmp.ne.s32.totalorder %s59, %s73
      %p75 = scmp.eq.s32.totalorder %s28, 0
      %p76 = por %p74, %p75
      %s78 = sadd.s32 %s77, 1
      %p81 = scmp.eq.s32.totalorder %s22, 1
      %p82 = scmp.ne.s32.totalorder %s77, %s79
      %p83 = scmp.eq.s32.totalorder %s22, 0
      %p84 = por %p82, %p83
      %p85 = scmp.ne.s32.totalorder %s77, %s79
      %p86 = scmp.eq.s32.totalorder %s27, 1
      %p87 = por %p85, %p86
      %p88 = scmp.ne.s32.totalorder %s79, %s80
      %p89 = scmp.eq.s32.totalorder %s27, 0
      %p90 = por %p88, %p89
      %p91 = scmp.ne.s32.totalorder %s79, %s80
      %p92 = scmp.eq.s32.totalorder %s28, 1
      %p93 = por %p91, %p92
      %p95 = scmp.ne.s32.totalorder %s80, %s94
      %p96 = scmp.eq.s32.totalorder %s28, 0
      %p97 = por %p95, %p96
      %s99 = sadd.s32 %s98, 1
      %p102 = scmp.eq.s32.totalorder %s22, 1
      %p103 = scmp.ne.s32.totalorder %s98, %s100
      %p104 = scmp.eq.s32.totalorder %s22, 0
      %p105 = por %p103, %p104
      %p106 = scmp.ne.s32.totalorder %s98, %s100
      %p107 = scmp.eq.s32.totalorder %s27, 1
      %p108 = por %p106, %p107
      %p109 = scmp.ne.s32.totalorder %s100, %s101
      %p110 = scmp.eq.s32.totalorder %s27, 0
      %p111 = por %p109, %p110
      %p112 = scmp.ne.s32.totalorder %s100, %s101
      %p113 = scmp.eq.s32.totalorder %s28, 1
      %p114 = por %p112, %p113
      %p116 = scmp.ne.s32.totalorder %s101, %s115
      %p117 = scmp.eq.s32.totalorder %s28, 0
      %p118 = por %p116, %p117
      %s120 = sadd.s32 %s119, 1
      %p123 = scmp.eq.s32.totalorder %s22, 1
      %p124 = scmp.ne.s32.totalorder %s119, %s121
      %p125 = scmp.eq.s32.totalorder %s22, 0
      %p126 = por %p124, %p125
      %p127 = scmp.ne.s32.totalorder %s119, %s121
      %p128 = scmp.eq.s32.totalorder %s27, 1
      %p129 = por %p127, %p128
      %p130 = scmp.ne.s32.totalorder %s121, %s122
      %p131 = scmp.eq.s32.totalorder %s27, 0
      %p132 = por %p130, %p131
      %p133 = scmp.ne.s32.totalorder %s121, %s122
      %p134 = scmp.eq.s32.totalorder %s28, 1
      %p135 = por %p133, %p134
      %p137 = scmp.ne.s32.totalorder %s122, %s136
      %p138 = scmp.eq.s32.totalorder %s28, 0
      %p139 = por %p137, %p138
      %s141 = sadd.s32 %s140, 1
      %p144 = scmp.eq.s32.totalorder %s22, 1
      %p145 = scmp.ne.s32.totalorder %s140, %s142
      %p146 = scmp.eq.s32.totalorder %s22, 0
      %p147 = por %p145, %p146
      %p148 = scmp.ne.s32.totalorder %s140, %s142
      %p149 = scmp.eq.s32.totalorder %s27, 1
      %p150 = por %p148, %p149
      %p151 = scmp.ne.s32.totalorder %s142, %s143
      %p152 = scmp.eq.s32.totalorder %s27, 0
      %p153 = por %p151, %p152
      %p154 = scmp.ne.s32.totalorder %s142, %s143
      %p155 = scmp.eq.s32.totalorder %s28, 1
      %p156 = por %p154, %p155
      %p158 = scmp.ne.s32.totalorder %s143, %s157
      %p159 = scmp.eq.s32.totalorder %s28, 0
      %p160 = por %p158, %p159
      %s162 = sadd.s32 %s161, 1
      %p165 = scmp.eq.s32.totalorder %s22, 1
      %p166 = scmp.ne.s32.totalorder %s161, %s163
      %p167 = scmp.eq.s32.totalorder %s22, 0
      %p168 = por %p166, %p167
      %p169 = scmp.ne.s32.totalorder %s161, %s163
      %p170 = scmp.eq.s32.totalorder %s27, 1
      %p171 = por %p169, %p170
      %p172 = scmp.ne.s32.totalorder %s163, %s164
      %p173 = scmp.eq.s32.totalorder %s27, 0
      %p174 = por %p172, %p173
      %p175 = scmp.ne.s32.totalorder %s163, %s164
      %p176 = scmp.eq.s32.totalorder %s28, 1
      %p177 = por %p175, %p176
      %p179 = scmp.ne.s32.totalorder %s164, %s178
      %p180 = scmp.eq.s32.totalorder %s28, 0
      %p181 = por %p179, %p180
      %s183 = sadd.s32 %s182, 1
      %p186 = scmp.eq.s32.totalorder %s22, 1
      %p187 = scmp.ne.s32.totalorder %s182, %s184
      %p188 = scmp.eq.s32.totalorder %s22, 0
      %p189 = por %p187, %p188
      %p190 = scmp.ne.s32.totalorder %s182, %s184
      %p191 = scmp.eq.s32.totalorder %s27, 1
      %p192 = por %p190, %p191
      %p193 = scmp.ne.s32.totalorder %s184, %s185
      %p194 = scmp.eq.s32.totalorder %s27, 0
      %p195 = por %p193, %p194
      %p196 = scmp.ne.s32.totalorder %s184, %s185
      %p197 = scmp.eq.s32.totalorder %s28, 1
      %p198 = por %p196, %p197
      %p200 = scmp.ne.s32.totalorder %s185, %s199
      %p201 = scmp.eq.s32.totalorder %s28, 0
      %p202 = por %p200, %p201
      %s203 = ssub.s32 %s22, %s29
      %p204 = scmp.eq.s32.totalorder %s203, 0
      %s206 = sadd.s32 %s205, 1
      %s207 = scalar_select %p204, %s205, %s206
      %p210 = pneg %p204
      %p211 = scmp.eq.s32.totalorder %s22, 1
      %p212 = por %p210, %p211
      %p213 = scmp.ne.s32.totalorder %s205, %s208
      %p214 = scmp.eq.s32.totalorder %s22, 0
      %p215 = por %p213, %p214
      %p216 = scmp.ne.s32.totalorder %s205, %s208
      %p217 = scmp.eq.s32.totalorder %s27, 1
      %p218 = por %p216, %p217
      %p219 = scmp.ne.s32.totalorder %s208, %s209
      %p220 = scmp.eq.s32.totalorder %s27, 0
      %p221 = por %p219, %p220
      %p222 = scmp.ne.s32.totalorder %s208, %s209
      %p223 = scmp.eq.s32.totalorder %s28, 1
      %p224 = por %p222, %p223
      %p226 = scmp.ne.s32.totalorder %s209, %s225
      %p227 = scmp.eq.s32.totalorder %s28, 0
      %p228 = por %p226, %p227
      %p229 = scmp.le.s32.totalorder 1, %s22
      %p230 = scmp.lt.s32.totalorder %s22, 3
      %p231 = pnand %p229, %p230
      %p232 = pneg %p231
      // Predicated region
      $region9: #{tpu_custom_call.1} parent=5 // pred_check
        _
      $region10: #{tpu_custom_call.1} parent=5 // pred_check_branch
        %234 = sbr.rel (%p231) target = $region12
      $region11: #{tpu_custom_call.1} parent=5 // pred_region
        %s235 = ssub.s32 %s22, 1
        // Predicated region
        $region13: #{tpu_custom_call.1} parent=11 // pred_check
          %p236 = pneg %p69
        $region14: #{tpu_custom_call.1} parent=11 // pred_check_branch
          %238 = sbr.rel (%p236) target = $region16
        $region15: #{tpu_custom_call.1} parent=11 // pred_region
          %s240 = ssub.s32 512, 512
          %241 = vsyncadd [#allocation6], %s240
          %s242 = sshll.u32 [#allocation5], 4
          %s243 = int_to_ptr.vmem [resolvable:$true] %s242
          %248 = dma.hbm_to_vmem [thread:$0]  %s1, 512, %s243, [#allocation6], 128, 128, 8
        $region16: #{tpu_custom_call.1} parent=11 // pred_fallthru
          _
        // Predicated region
        $region17: #{tpu_custom_call.1} parent=11 // pred_check
          %p249 = pneg %p90
        $region18: #{tpu_custom_call.1} parent=11 // pred_check_branch
          %251 = sbr.rel (%p249) target = $region20
        $region19: #{tpu_custom_call.1} parent=11 // pred_region
          %s253 = ssub.s32 6144, 6144
          %254 = vsyncadd [#allocation6], %s253
          %s255 = sshll.u32 [#allocation7], 4
          %s256 = int_to_ptr.vmem [resolvable:$true] %s255
          %261 = dma.hbm_to_vmem [thread:$0]  %s2, 6144, %s256, [#allocation6], 128, 128, 8
        $region20: #{tpu_custom_call.1} parent=11 // pred_fallthru
          _
        // Predicated region
        $region21: #{tpu_custom_call.1} parent=11 // pred_check
          %p262 = pneg %p111
        $region22: #{tpu_custom_call.1} parent=11 // pred_check_branch
          %264 = sbr.rel (%p262) target = $region24
        $region23: #{tpu_custom_call.1} parent=11 // pred_region
          _
        $region24: #{tpu_custom_call.1} parent=11 // pred_fallthru
          _
        // Predicated region
        $region25: #{tpu_custom_call.1} parent=11 // pred_check
          %p265 = pneg %p132
        $region26: #{tpu_custom_call.1} parent=11 // pred_check_branch
          %267 = sbr.rel (%p265) target = $region28
        $region27: #{tpu_custom_call.1} parent=11 // pred_region
          _
        $region28: #{tpu_custom_call.1} parent=11 // pred_fallthru
          _
        // Predicated region
        $region29: #{tpu_custom_call.1} parent=11 // pred_check
          %p268 = pneg %p153
        $region30: #{tpu_custom_call.1} parent=11 // pred_check_branch
          %270 = sbr.rel (%p268) target = $region32
        $region31: #{tpu_custom_call.1} parent=11 // pred_region
          %s272 = ssub.s32 6144, 6144
          %273 = vsyncadd [#allocation9], %s272
          %s274 = sshll.u32 [#allocation8], 4
          %s275 = int_to_ptr.vmem [resolvable:$true] %s274
          %280 = dma.hbm_to_vmem [thread:$0]  %s5, 6144, %s275, [#allocation9], 128, 128, 8
        $region32: #{tpu_custom_call.1} parent=11 // pred_fallthru
          _
        // Predicated region
        $region33: #{tpu_custom_call.1} parent=11 // pred_check
          %p281 = pneg %p174
        $region34: #{tpu_custom_call.1} parent=11 // pred_check_branch
          %283 = sbr.rel (%p281) target = $region36
        $region35: #{tpu_custom_call.1} parent=11 // pred_region
          _
        $region36: #{tpu_custom_call.1} parent=11 // pred_fallthru
          _
        // Predicated region
        $region37: #{tpu_custom_call.1} parent=11 // pred_check
          %p284 = pneg %p195
        $region38: #{tpu_custom_call.1} parent=11 // pred_check_branch
          %286 = sbr.rel (%p284) target = $region40
        $region39: #{tpu_custom_call.1} parent=11 // pred_region
          _
        $region40: #{tpu_custom_call.1} parent=11 // pred_fallthru
          _
      $region12: #{tpu_custom_call.1} parent=5 // pred_fallthru
        _
      %p287 = scmp.lt.s32.totalorder %s22, 2
      // Predicated region
      $region41: #{tpu_custom_call.1} parent=5 // pred_check
        %p288 = pneg %p287
      $region42: #{tpu_custom_call.1} parent=5 // pred_check_branch
        %290 = sbr.rel (%p288) target = $region44
      $region43: #{tpu_custom_call.1} parent=5 // pred_region
        // Predicated region
        $region45: #{tpu_custom_call.1} parent=43 // pred_check
          %p291 = pneg %p42
        $region46: #{tpu_custom_call.1} parent=43 // pred_check_branch
          %293 = sbr.rel (%p291) target = $region48
        $region47: #{tpu_custom_call.1} parent=43 // pred_region
          %s294 = sand.u32 %s32, 1
          %s295 = scalar_lea.sflag [#allocation3], %s294
          %s296 = sand.u32 %s32, 1
          %s297 = smul.addr %s296, 16
          %s298 = scalar_lea.vmem [#allocation2], %s297
          %s300 = ssub.s32 256, 256
          %301 = vsyncadd %s295, %s300
          %s302 = smul.addr %s22, 2
          %s303 = smul.addr %s302, 128
          %s304 = scalar_lea.hbm %s0, %s303
          %s305 = sshll.u32 %s298, 4
          %s306 = int_to_ptr.vmem [resolvable:$true] %s305
          %311 = dma.hbm_to_vmem [thread:$0]  %s304, 256, %s306, %s295, 128, 128, 8
        $region48: #{tpu_custom_call.1} parent=43 // pred_fallthru
          _
      $region44: #{tpu_custom_call.1} parent=5 // pred_fallthru
        _
      %p312 = scmp.le.s32.totalorder 1, %s22
      %p313 = scmp.lt.s32.totalorder %s22, 3
      %p314 = pnand %p312, %p313
      %p315 = pneg %p314
      // Predicated region
      $region49: #{tpu_custom_call.1} parent=5 // pred_check
        _
      $region50: #{tpu_custom_call.1} parent=5 // pred_check_branch
        %317 = sbr.rel (%p314) target = $region52
      $region51: #{tpu_custom_call.1} parent=5 // pred_region
        %s318 = ssub.s32 %s22, 1
        %s319 = sand.u32 %s35, 1
        %s320 = scalar_lea.sflag [#allocation3], %s319
        %s321 = sand.u32 %s35, 1
        %s322 = smul.addr %s321, 16
        %s323 = scalar_lea.vmem [#allocation2], %s322
        // Predicated region
        $region53: #{tpu_custom_call.1} parent=51 // pred_check
          %p324 = pneg %p48
        $region54: #{tpu_custom_call.1} parent=51 // pred_check_branch
          %326 = sbr.rel (%p324) target = $region56
        $region55: #{tpu_custom_call.1} parent=51 // pred_region
          %327 = dma.done %s320, 256
        $region56: #{tpu_custom_call.1} parent=51 // pred_fallthru
          _
        // Predicated region
        $region57: #{tpu_custom_call.1} parent=51 // pred_check
          %p328 = pneg %p69
        $region58: #{tpu_custom_call.1} parent=51 // pred_check_branch
          %330 = sbr.rel (%p328) target = $region60
        $region59: #{tpu_custom_call.1} parent=51 // pred_region
          %331 = dma.done [#allocation6], 512
        $region60: #{tpu_custom_call.1} parent=51 // pred_fallthru
          _
        // Predicated region
        $region61: #{tpu_custom_call.1} parent=51 // pred_check
          %p332 = pneg %p90
        $region62: #{tpu_custom_call.1} parent=51 // pred_check_branch
          %334 = sbr.rel (%p332) target = $region64
        $region63: #{tpu_custom_call.1} parent=51 // pred_region
          %335 = dma.done [#allocation6], 6144
        $region64: #{tpu_custom_call.1} parent=51 // pred_fallthru
          _
        // Predicated region
        $region65: #{tpu_custom_call.1} parent=51 // pred_check
          %p336 = pneg %p153
        $region66: #{tpu_custom_call.1} parent=51 // pred_check_branch
          %338 = sbr.rel (%p336) target = $region68
        $region67: #{tpu_custom_call.1} parent=51 // pred_region
          %339 = dma.done [#allocation9], 6144
        $region68: #{tpu_custom_call.1} parent=51 // pred_fallthru
          _
        %s340 = sand.u32 %s35, 1
        %s341 = scalar_lea.sflag [#allocation3], %s340
        %s342 = sand.u32 %s35, 1
        %s343 = smul.addr %s342, 16
        %s344 = scalar_lea.vmem [#allocation2], %s343
        %p345 = pneg %p48
        %p346 = pneg %p45
        %p347 = pneg %p69
        %p348 = pneg %p66
        %p349 = pneg %p90
        %p350 = pneg %p87
        %p351 = pneg %p111
        %p352 = pneg %p108
        %p353 = pneg %p132
        %p354 = pneg %p129
        %p355 = pneg %p153
        %p356 = pneg %p150
        %p357 = pneg %p174
        %p358 = pneg %p171
        %p359 = pneg %p195
        %p360 = pneg %p192
        %p361 = pneg %p221
        %p362 = pneg %p218
        %s363 = sand.u32 %s208, 1
        %s364 = scalar_lea.sflag [#allocation4], %s363
        %s365 = sand.u32 %s208, 1
        %s366 = smul.addr %s365, 16
        %s367 = scalar_lea.vmem [#allocation10], %s366
        %v368 = vld [vmem:[%s323] sm:$0xff]
        %v369 = vld [vmem:[%s323 + $0x8] sm:$0xff]
        %v370 = vld [vmem:[#allocation7] sm:$0xff]
        %v371 = vld [vmem:[#allocation7 + $0x8] sm:$0xff]
        %v372 = vld [vmem:[#allocation7 + $0x10] sm:$0xff]
        %v373 = vld [vmem:[#allocation7 + $0x18] sm:$0xff]
        %v374 = vld [vmem:[#allocation7 + $0x20] sm:$0xff]
        %v375 = vld [vmem:[#allocation7 + $0x28] sm:$0xff]
        %v376 = vld [vmem:[#allocation7 + $0x30] sm:$0xff]
        %v377 = vld [vmem:[#allocation7 + $0x38] sm:$0xff]
        %v378 = vld [vmem:[#allocation7 + $0x40] sm:$0xff]
        %v379 = vld [vmem:[#allocation7 + $0x48] sm:$0xff]
        %v380 = vld [vmem:[#allocation7 + $0x50] sm:$0xff]
        %v381 = vld [vmem:[#allocation7 + $0x58] sm:$0xff]
        %v382 = vld [vmem:[#allocation7 + $0x60] sm:$0xff]
        %v383 = vld [vmem:[#allocation7 + $0x68] sm:$0xff]
        %v384 = vld [vmem:[#allocation7 + $0x70] sm:$0xff]
        %v385 = vld [vmem:[#allocation7 + $0x78] sm:$0xff]
        %386 = vmatprep.subr.mxu0 0.0
        %387 = vmatpush1.msra.mxu0 %v370
        %388 = vmatprep.subr.mxu0 0.0
        %389 = vmatpush1.msra.mxu0 %v371
        %390 = vmatprep.subr.mxu0 0.0
        %391 = vmatpush1.msra.mxu0 %v372
        %392 = vmatprep.subr.mxu0 0.0
        %393 = vmatpush1.msra.mxu0 %v373
        %394 = vmatprep.subr.mxu0 0.0
        %395 = vmatpush1.msra.mxu0 %v374
        %396 = vmatprep.subr.mxu0 0.0
        %397 = vmatpush1.msra.mxu0 %v375
        %398 = vmatprep.subr.mxu0 0.0
        %399 = vmatpush1.msra.mxu0 %v376
        %400 = vmatprep.subr.mxu0 0.0
        %401 = vmatpush1.msra.mxu0 %v377
        %402 = vmatprep.subr.mxu0 0.0
        %403 = vmatpush1.msra.mxu0 %v378
        %404 = vmatprep.subr.mxu0 0.0
        %405 = vmatpush1.msra.mxu0 %v379
        %406 = vmatprep.subr.mxu0 0.0
        %407 = vmatpush1.msra.mxu0 %v380
        %408 = vmatprep.subr.mxu0 0.0
        %409 = vmatpush1.msra.mxu0 %v381
        %410 = vmatprep.subr.mxu0 0.0
        %411 = vmatpush1.msra.mxu0 %v382
        %412 = vmatprep.subr.mxu0 0.0
        %413 = vmatpush1.msra.mxu0 %v383
        %414 = vmatprep.subr.mxu0 0.0
        %415 = vmatpush1.msra.mxu0 %v384
        %416 = vmatprep.subr.mxu0 0.0
        %417 = vmatpush1.msra.mxu0 %v385
        %418 = vmatprep.subr.mxu0 0.0
        %419 = vmatpush1.msra.mxu0 0.0
        %420 = vmatprep.subr.mxu0 0.0
        %421 = vmatpush1.msra.mxu0 0.0
        %422 = vmatprep.subr.mxu0 0.0
        %423 = vmatpush1.msra.mxu0 0.0
        %424 = vmatprep.subr.mxu0 0.0
        %425 = vmatpush1.msra.mxu0 0.0
        %426 = vmatprep.subr.mxu0 0.0
        %427 = vmatpush1.msra.mxu0 0.0
        %428 = vmatprep.subr.mxu0 0.0
        %429 = vmatpush1.msra.mxu0 0.0
        %430 = vmatprep.subr.mxu0 0.0
        %431 = vmatpush1.msra.mxu0 0.0
        %432 = vmatprep.subr.mxu0 0.0
        %433 = vmatpush1.msra.mxu0 0.0
        %434 = vmatprep.subr.mxu0 0.0
        %435 = vmatpush1.msra.mxu0 0.0
        %436 = vmatprep.subr.mxu0 0.0
        %437 = vmatpush1.msra.mxu0 0.0
        %438 = vmatprep.subr.mxu0 0.0
        %439 = vmatpush1.msra.mxu0 0.0
        %440 = vmatprep.subr.mxu0 0.0
        %441 = vmatpush1.msra.mxu0 0.0
        %442 = vmatprep.subr.mxu0 0.0
        %443 = vmatpush1.msra.mxu0 0.0
        %444 = vmatprep.subr.mxu0 0.0
        %445 = vmatpush1.msra.mxu0 0.0
        %446 = vmatprep.subr.mxu0 0.0
        %447 = vmatpush1.msra.mxu0 0.0
        %448 = vmatprep.subr.mxu0 0.0
        %449 = vmatpush1.msra.mxu0 0.0
        %450 = vmatprep.mubr.f32.mxu0 0.0
        %451 = vmatmul.mubr.f32.gmra.mrb[0].mxu0 %v368
        %v452 = vpop.f32.mrb[0].mxu0
        %v453 = vadd.f32 0.0, %v452
        %v454 = vpop.f32.mrb[0].mxu0
        %455 = vmatprep.mubr.f32.mxu0 0.0
        %456 = vmatmul.mubr.f32.gmra.mrb[0].mxu0 %v369
        %v457 = vpop.f32.mrb[0].mxu0
        %v458 = vadd.f32 0.0, %v457
        %v459 = vpop.f32.mrb[0].mxu0
        %460 = vdwg.mxu0
        %s461 = scalar_lea.vmem [#allocation7], 128
        %v462 = vld [vmem:[%s461] sm:$0xff]
        %v463 = vld [vmem:[%s461 + $0x8] sm:$0xff]
        %v464 = vld [vmem:[%s461 + $0x10] sm:$0xff]
        %v465 = vld [vmem:[%s461 + $0x18] sm:$0xff]
        %v466 = vld [vmem:[%s461 + $0x20] sm:$0xff]
        %v467 = vld [vmem:[%s461 + $0x28] sm:$0xff]
        %v468 = vld [vmem:[%s461 + $0x30] sm:$0xff]
        %v469 = vld [vmem:[%s461 + $0x38] sm:$0xff]
        %v470 = vld [vmem:[%s461 + $0x40] sm:$0xff]
        %v471 = vld [vmem:[%s461 + $0x48] sm:$0xff]
        %v472 = vld [vmem:[%s461 + $0x50] sm:$0xff]
        %v473 = vld [vmem:[%s461 + $0x58] sm:$0xff]
        %v474 = vld [vmem:[%s461 + $0x60] sm:$0xff]
        %v475 = vld [vmem:[%s461 + $0x68] sm:$0xff]
        %v476 = vld [vmem:[%s461 + $0x70] sm:$0xff]
        %v477 = vld [vmem:[%s461 + $0x78] sm:$0xff]
        %s478 = scalar_lea.vmem [#allocation7], 256
        %v479 = vld [vmem:[%s478] sm:$0xff]
        %v480 = vld [vmem:[%s478 + $0x8] sm:$0xff]
        %v481 = vld [vmem:[%s478 + $0x10] sm:$0xff]
        %v482 = vld [vmem:[%s478 + $0x18] sm:$0xff]
        %v483 = vld [vmem:[%s478 + $0x20] sm:$0xff]
        %v484 = vld [vmem:[%s478 + $0x28] sm:$0xff]
        %v485 = vld [vmem:[%s478 + $0x30] sm:$0xff]
        %v486 = vld [vmem:[%s478 + $0x38] sm:$0xff]
        %v487 = vld [vmem:[%s478 + $0x40] sm:$0xff]
        %v488 = vld [vmem:[%s478 + $0x48] sm:$0xff]
        %v489 = vld [vmem:[%s478 + $0x50] sm:$0xff]
        %v490 = vld [vmem:[%s478 + $0x58] sm:$0xff]
        %v491 = vld [vmem:[%s478 + $0x60] sm:$0xff]
        %v492 = vld [vmem:[%s478 + $0x68] sm:$0xff]
        %v493 = vld [vmem:[%s478 + $0x70] sm:$0xff]
        %v494 = vld [vmem:[%s478 + $0x78] sm:$0xff]
        %495 = vmatprep.subr.mxu0 0.0
        %496 = vmatpush1.msra.mxu0 %v479
        %497 = vmatprep.subr.mxu0 0.0
        %498 = vmatpush1.msra.mxu0 %v480
        %499 = vmatprep.subr.mxu0 0.0
        %500 = vmatpush1.msra.mxu0 %v481
        %501 = vmatprep.subr.mxu0 0.0
        %502 = vmatpush1.msra.mxu0 %v482
        %503 = vmatprep.subr.mxu0 0.0
        %504 = vmatpush1.msra.mxu0 %v483
        %505 = vmatprep.subr.mxu0 0.0
        %506 = vmatpush1.msra.mxu0 %v484
        %507 = vmatprep.subr.mxu0 0.0
        %508 = vmatpush1.msra.mxu0 %v485
        %509 = vmatprep.subr.mxu0 0.0
        %510 = vmatpush1.msra.mxu0 %v486
        %511 = vmatprep.subr.mxu0 0.0
        %512 = vmatpush1.msra.mxu0 %v487
        %513 = vmatprep.subr.mxu0 0.0
        %514 = vmatpush1.msra.mxu0 %v488
        %515 = vmatprep.subr.mxu0 0.0
        %516 = vmatpush1.msra.mxu0 %v489
        %517 = vmatprep.subr.mxu0 0.0
        %518 = vmatpush1.msra.mxu0 %v490
        %519 = vmatprep.subr.mxu0 0.0
        %520 = vmatpush1.msra.mxu0 %v491
        %521 = vmatprep.subr.mxu0 0.0
        %522 = vmatpush1.msra.mxu0 %v492
        %523 = vmatprep.subr.mxu0 0.0
        %524 = vmatpush1.msra.mxu0 %v493
        %525 = vmatprep.subr.mxu0 0.0
        %526 = vmatpush1.msra.mxu0 %v494
        %527 = vmatprep.subr.mxu0 0.0
        %528 = vmatpush1.msra.mxu0 0.0
        %529 = vmatprep.subr.mxu0 0.0
        %530 = vmatpush1.msra.mxu0 0.0
        %531 = vmatprep.subr.mxu0 0.0
        %532 = vmatpush1.msra.mxu0 0.0
        %533 = vmatprep.subr.mxu0 0.0
        %534 = vmatpush1.msra.mxu0 0.0
        %535 = vmatprep.subr.mxu0 0.0
        %536 = vmatpush1.msra.mxu0 0.0
        %537 = vmatprep.subr.mxu0 0.0
        %538 = vmatpush1.msra.mxu0 0.0
        %539 = vmatprep.subr.mxu0 0.0
        %540 = vmatpush1.msra.mxu0 0.0
        %541 = vmatprep.subr.mxu0 0.0
        %542 = vmatpush1.msra.mxu0 0.0
        %543 = vmatprep.subr.mxu0 0.0
        %544 = vmatpush1.msra.mxu0 0.0
        %545 = vmatprep.subr.mxu0 0.0
        %546 = vmatpush1.msra.mxu0 0.0
        %547 = vmatprep.subr.mxu0 0.0
        %548 = vmatpush1.msra.mxu0 0.0
        %549 = vmatprep.subr.mxu0 0.0
        %550 = vmatpush1.msra.mxu0 0.0
        %551 = vmatprep.subr.mxu0 0.0
        %552 = vmatpush1.msra.mxu0 0.0
        %553 = vmatprep.subr.mxu0 0.0
        %554 = vmatpush1.msra.mxu0 0.0
        %555 = vmatprep.subr.mxu0 0.0
        %556 = vmatpush1.msra.mxu0 0.0
        %557 = vmatprep.subr.mxu0 0.0
        %558 = vmatpush1.msra.mxu0 0.0
        %559 = vmatprep.mubr.f32.mxu0 0.0
        %560 = vmatmul.mubr.f32.gmra.mrb[0].mxu0 %v368
        %v561 = vpop.f32.mrb[0].mxu0
        %v562 = vadd.f32 0.0, %v561
        %v563 = vpop.f32.mrb[0].mxu0
        %564 = vmatprep.mubr.f32.mxu0 0.0
        %565 = vmatmul.mubr.f32.gmra.mrb[0].mxu0 %v369
        %v566 = vpop.f32.mrb[0].mxu0
        %v567 = vadd.f32 0.0, %v566
        %v568 = vpop.f32.mrb[0].mxu0
        %569 = vdwg.mxu0
        %v570 = vld [vmem:[#allocation5] sm:$0xff]
        %v571 = vld [vmem:[#allocation5 + $0x8] sm:$0xff]
        %vm572 = vcmask 130048
        %v574 = vsel %vm572, %v570, 0
        %v577 = vsel %vm572, %v571, 0
        %579 = vmatprep.subr.mxu0 0.0
        %580 = vmatpush1.msra.mxu0 %v453
        %581 = vmatprep.subr.mxu0 0.0
        %582 = vmatpush1.msra.mxu0 %v458
        %583 = vmatprep.subr.mxu0 0.0
        %584 = vmatpush1.msra.mxu0 0.0
        %585 = vmatprep.subr.mxu0 0.0
        %586 = vmatpush1.msra.mxu0 0.0
        %587 = vmatprep.subr.mxu0 0.0
        %588 = vmatpush1.msra.mxu0 0.0
        %589 = vmatprep.subr.mxu0 0.0
        %590 = vmatpush1.msra.mxu0 0.0
        %591 = vmatprep.subr.mxu0 0.0
        %592 = vmatpush1.msra.mxu0 0.0
        %593 = vmatprep.subr.mxu0 0.0
        %594 = vmatpush1.msra.mxu0 0.0
        %595 = vmatprep.subr.mxu0 0.0
        %596 = vmatpush1.msra.mxu0 0.0
        %597 = vmatprep.subr.mxu0 0.0
        %598 = vmatpush1.msra.mxu0 0.0
        %599 = vmatprep.subr.mxu0 0.0
        %600 = vmatpush1.msra.mxu0 0.0
        %601 = vmatprep.subr.mxu0 0.0
        %602 = vmatpush1.msra.mxu0 0.0
        %603 = vmatprep.subr.mxu0 0.0
        %604 = vmatpush1.msra.mxu0 0.0
        %605 = vmatprep.subr.mxu0 0.0
        %606 = vmatpush1.msra.mxu0 0.0
        %607 = vmatprep.subr.mxu0 0.0
        %608 = vmatpush1.msra.mxu0 0.0
        %609 = vmatprep.subr.mxu0 0.0
        %610 = vmatpush1.msra.mxu0 0.0
        %611 = vmatprep.subr.mxu0 0.0
        %612 = vmatpush1.msra.mxu0 0.0
        %613 = vmatprep.subr.mxu0 0.0
        %614 = vmatpush1.msra.mxu0 0.0
        %615 = vmatprep.subr.mxu0 0.0
        %616 = vmatpush1.msra.mxu0 0.0
        %617 = vmatprep.subr.mxu0 0.0
        %618 = vmatpush1.msra.mxu0 0.0
        %619 = vmatprep.subr.mxu0 0.0
        %620 = vmatpush1.msra.mxu0 0.0
        %621 = vmatprep.subr.mxu0 0.0
        %622 = vmatpush1.msra.mxu0 0.0
        %623 = vmatprep.subr.mxu0 0.0
        %624 = vmatpush1.msra.mxu0 0.0
        %625 = vmatprep.subr.mxu0 0.0
        %626 = vmatpush1.msra.mxu0 0.0
        %627 = vmatprep.subr.mxu0 0.0
        %628 = vmatpush1.msra.mxu0 0.0
        %629 = vmatprep.subr.mxu0 0.0
        %630 = vmatpush1.msra.mxu0 0.0
        %631 = vmatprep.subr.mxu0 0.0
        %632 = vmatpush1.msra.mxu0 0.0
        %633 = vmatprep.subr.mxu0 0.0
        %634 = vmatpush1.msra.mxu0 0.0
        %635 = vmatprep.subr.mxu0 0.0
        %636 = vmatpush1.msra.mxu0 0.0
        %637 = vmatprep.subr.mxu0 0.0
        %638 = vmatpush1.msra.mxu0 0.0
        %639 = vmatprep.subr.mxu0 0.0
        %640 = vmatpush1.msra.mxu0 0.0
        %641 = vmatprep.subr.mxu0 0.0
        %642 = vmatpush1.msra.mxu0 0.0
        %643 = vmatprep.mubr.f32.mxu0 0.0
        %644 = vmatmul.mubr.f32.gmra.mrb[0].mxu0 %v574
        %v645 = vpop.f32.mrb[0].mxu0
        %v646 = vadd.f32 0.0, %v645
        %v647 = vpop.f32.mrb[0].mxu0
        %648 = vmatprep.mubr.f32.mxu0 0.0
        %649 = vmatmul.mubr.f32.gmra.mrb[0].mxu0 %v577
        %v650 = vpop.f32.mrb[0].mxu0
        %v651 = vadd.f32 0.0, %v650
        %v652 = vpop.f32.mrb[0].mxu0
        %653 = vdwg.mxu0
        %s654 = scalar_lea.vmem [#allocation5], 16
        %v655 = vld [vmem:[%s654] sm:$0xff]
        %v656 = vld [vmem:[%s654 + $0x8] sm:$0xff]
        %v658 = vsel %vm572, %v655, 0
        %v661 = vsel %vm572, %v656, 0
        %663 = vmatprep.subr.mxu0 0.0
        %664 = vmatpush1.msra.mxu0 %v562
        %665 = vmatprep.subr.mxu0 0.0
        %666 = vmatpush1.msra.mxu0 %v567
        %667 = vmatprep.subr.mxu0 0.0
        %668 = vmatpush1.msra.mxu0 0.0
        %669 = vmatprep.subr.mxu0 0.0
        %670 = vmatpush1.msra.mxu0 0.0
        %671 = vmatprep.subr.mxu0 0.0
        %672 = vmatpush1.msra.mxu0 0.0
        %673 = vmatprep.subr.mxu0 0.0
        %674 = vmatpush1.msra.mxu0 0.0
        %675 = vmatprep.subr.mxu0 0.0
        %676 = vmatpush1.msra.mxu0 0.0
        %677 = vmatprep.subr.mxu0 0.0
        %678 = vmatpush1.msra.mxu0 0.0
        %679 = vmatprep.subr.mxu0 0.0
        %680 = vmatpush1.msra.mxu0 0.0
        %681 = vmatprep.subr.mxu0 0.0
        %682 = vmatpush1.msra.mxu0 0.0
        %683 = vmatprep.subr.mxu0 0.0
        %684 = vmatpush1.msra.mxu0 0.0
        %685 = vmatprep.subr.mxu0 0.0
        %686 = vmatpush1.msra.mxu0 0.0
        %687 = vmatprep.subr.mxu0 0.0
        %688 = vmatpush1.msra.mxu0 0.0
        %689 = vmatprep.subr.mxu0 0.0
        %690 = vmatpush1.msra.mxu0 0.0
        %691 = vmatprep.subr.mxu0 0.0
        %692 = vmatpush1.msra.mxu0 0.0
        %693 = vmatprep.subr.mxu0 0.0
        %694 = vmatpush1.msra.mxu0 0.0
        %695 = vmatprep.subr.mxu0 0.0
        %696 = vmatpush1.msra.mxu0 0.0
        %697 = vmatprep.subr.mxu0 0.0
        %698 = vmatpush1.msra.mxu0 0.0
        %699 = vmatprep.subr.mxu0 0.0
        %700 = vmatpush1.msra.mxu0 0.0
        %701 = vmatprep.subr.mxu0 0.0
        %702 = vmatpush1.msra.mxu0 0.0
        %703 = vmatprep.subr.mxu0 0.0
        %704 = vmatpush1.msra.mxu0 0.0
        %705 = vmatprep.subr.mxu0 0.0
        %706 = vmatpush1.msra.mxu0 0.0
        %707 = vmatprep.subr.mxu0 0.0
        %708 = vmatpush1.msra.mxu0 0.0
        %709 = vmatprep.subr.mxu0 0.0
        %710 = vmatpush1.msra.mxu0 0.0
        %711 = vmatprep.subr.mxu0 0.0
        %712 = vmatpush1.msra.mxu0 0.0
        %713 = vmatprep.subr.mxu0 0.0
        %714 = vmatpush1.msra.mxu0 0.0
        %715 = vmatprep.subr.mxu0 0.0
        %716 = vmatpush1.msra.mxu0 0.0
        %717 = vmatprep.subr.mxu0 0.0
        %718 = vmatpush1.msra.mxu0 0.0
        %719 = vmatprep.subr.mxu0 0.0
        %720 = vmatpush1.msra.mxu0 0.0
        %721 = vmatprep.subr.mxu0 0.0
        %722 = vmatpush1.msra.mxu0 0.0
        %723 = vmatprep.subr.mxu0 0.0
        %724 = vmatpush1.msra.mxu0 0.0
        %725 = vmatprep.subr.mxu0 0.0
        %726 = vmatpush1.msra.mxu0 0.0
        %727 = vmatprep.mubr.f32.mxu0 0.0
        %728 = vmatmul.mubr.f32.gmra.mrb[0].mxu0 %v658
        %v729 = vpop.f32.mrb[0].mxu0
        %v730 = vadd.f32 0.0, %v729
        %v731 = vpop.f32.mrb[0].mxu0
        %732 = vmatprep.mubr.f32.mxu0 0.0
        %733 = vmatmul.mubr.f32.gmra.mrb[0].mxu0 %v661
        %v734 = vpop.f32.mrb[0].mxu0
        %v735 = vadd.f32 0.0, %v734
        %v736 = vpop.f32.mrb[0].mxu0
        %737 = vdwg.mxu0
        %738 = vmatprep.subr.mxu0 0.0
        %739 = vmatpush1.msra.mxu0 %v462
        %740 = vmatprep.subr.mxu0 0.0
        %741 = vmatpush1.msra.mxu0 %v463
        %742 = vmatprep.subr.mxu0 0.0
        %743 = vmatpush1.msra.mxu0 %v464
        %744 = vmatprep.subr.mxu0 0.0
        %745 = vmatpush1.msra.mxu0 %v465
        %746 = vmatprep.subr.mxu0 0.0
        %747 = vmatpush1.msra.mxu0 %v466
        %748 = vmatprep.subr.mxu0 0.0
        %749 = vmatpush1.msra.mxu0 %v467
        %750 = vmatprep.subr.mxu0 0.0
        %751 = vmatpush1.msra.mxu0 %v468
        %752 = vmatprep.subr.mxu0 0.0
        %753 = vmatpush1.msra.mxu0 %v469
        %754 = vmatprep.subr.mxu0 0.0
        %755 = vmatpush1.msra.mxu0 %v470
        %756 = vmatprep.subr.mxu0 0.0
        %757 = vmatpush1.msra.mxu0 %v471
        %758 = vmatprep.subr.mxu0 0.0
        %759 = vmatpush1.msra.mxu0 %v472
        %760 = vmatprep.subr.mxu0 0.0
        %761 = vmatpush1.msra.mxu0 %v473
        %762 = vmatprep.subr.mxu0 0.0
        %763 = vmatpush1.msra.mxu0 %v474
        %764 = vmatprep.subr.mxu0 0.0
        %765 = vmatpush1.msra.mxu0 %v475
        %766 = vmatprep.subr.mxu0 0.0
        %767 = vmatpush1.msra.mxu0 %v476
        %768 = vmatprep.subr.mxu0 0.0
        %769 = vmatpush1.msra.mxu0 %v477
        %770 = vmatprep.subr.mxu0 0.0
        %771 = vmatpush1.msra.mxu0 0.0
        %772 = vmatprep.subr.mxu0 0.0
        %773 = vmatpush1.msra.mxu0 0.0
        %774 = vmatprep.subr.mxu0 0.0
        %775 = vmatpush1.msra.mxu0 0.0
        %776 = vmatprep.subr.mxu0 0.0
        %777 = vmatpush1.msra.mxu0 0.0
        %778 = vmatprep.subr.mxu0 0.0
        %779 = vmatpush1.msra.mxu0 0.0
        %780 = vmatprep.subr.mxu0 0.0
        %781 = vmatpush1.msra.mxu0 0.0
        %782 = vmatprep.subr.mxu0 0.0
        %783 = vmatpush1.msra.mxu0 0.0
        %784 = vmatprep.subr.mxu0 0.0
        %785 = vmatpush1.msra.mxu0 0.0
        %786 = vmatprep.subr.mxu0 0.0
        %787 = vmatpush1.msra.mxu0 0.0
        %788 = vmatprep.subr.mxu0 0.0
        %789 = vmatpush1.msra.mxu0 0.0
        %790 = vmatprep.subr.mxu0 0.0
        %791 = vmatpush1.msra.mxu0 0.0
        %792 = vmatprep.subr.mxu0 0.0
        %793 = vmatpush1.msra.mxu0 0.0
        %794 = vmatprep.subr.mxu0 0.0
        %795 = vmatpush1.msra.mxu0 0.0
        %796 = vmatprep.subr.mxu0 0.0
        %797 = vmatpush1.msra.mxu0 0.0
        %798 = vmatprep.subr.mxu0 0.0
        %799 = vmatpush1.msra.mxu0 0.0
        %800 = vmatprep.subr.mxu0 0.0
        %801 = vmatpush1.msra.mxu0 0.0
        %802 = vmatprep.mubr.f32.mxu0 0.0
        %803 = vmatmul.mubr.f32.gmra.mrb[0].mxu0 %v368
        %v804 = vpop.f32.mrb[0].mxu0
        %v805 = vadd.f32 %v646, %v804
        %v806 = vpop.f32.mrb[0].mxu0
        %807 = vmatprep.mubr.f32.mxu0 0.0
        %808 = vmatmul.mubr.f32.gmra.mrb[0].mxu0 %v369
        %v809 = vpop.f32.mrb[0].mxu0
        %v810 = vadd.f32 %v651, %v809
        %v811 = vpop.f32.mrb[0].mxu0
        %812 = vdwg.mxu0
        %v813 = vadd.f32 %v805, %v730
        %v814 = vadd.f32 %v810, %v735
        %v815 = vld [vmem:[%s3] sm:$0x1]
        %v817 = vlaneseq
        %v818 = vshrl.u32 %v817, 7
        %v819 = vsub.s32 0, %v818
        %v820 = vrot.slane %v815, %v819
        %v822 = vmul.f32 %v813, %v820
        %v823 = vmul.f32 %v814, %v820
        %v824 = vld [vmem:[%s4] sm:$0x1]
        %v826 = vlaneseq
        %v827 = vshrl.u32 %v826, 7
        %v828 = vsub.s32 0, %v827
        %v829 = vrot.slane %v824, %v828
        %v831 = vadd.f32 %v822, %v829
        %v832 = vadd.f32 %v823, %v829
        %v833 = vmax.f32 %v831, 0.0
        %v834 = vmax.f32 %v832, 0.0
        %v835 = vld [vmem:[#allocation8] sm:$0xff]
        %v836 = vld [vmem:[#allocation8 + $0x8] sm:$0xff]
        %v837 = vld [vmem:[#allocation8 + $0x10] sm:$0xff]
        %v838 = vld [vmem:[#allocation8 + $0x18] sm:$0xff]
        %v839 = vld [vmem:[#allocation8 + $0x20] sm:$0xff]
        %v840 = vld [vmem:[#allocation8 + $0x28] sm:$0xff]
        %v841 = vld [vmem:[#allocation8 + $0x30] sm:$0xff]
        %v842 = vld [vmem:[#allocation8 + $0x38] sm:$0xff]
        %v843 = vld [vmem:[#allocation8 + $0x40] sm:$0xff]
        %v844 = vld [vmem:[#allocation8 + $0x48] sm:$0xff]
        %v845 = vld [vmem:[#allocation8 + $0x50] sm:$0xff]
        %v846 = vld [vmem:[#allocation8 + $0x58] sm:$0xff]
        %v847 = vld [vmem:[#allocation8 + $0x60] sm:$0xff]
        %v848 = vld [vmem:[#allocation8 + $0x68] sm:$0xff]
        %v849 = vld [vmem:[#allocation8 + $0x70] sm:$0xff]
        %v850 = vld [vmem:[#allocation8 + $0x78] sm:$0xff]
        %851 = vmatprep.subr.mxu0 0.0
        %852 = vmatpush1.msra.mxu0 %v835
        %853 = vmatprep.subr.mxu0 0.0
        %854 = vmatpush1.msra.mxu0 %v836
        %855 = vmatprep.subr.mxu0 0.0
        %856 = vmatpush1.msra.mxu0 %v837
        %857 = vmatprep.subr.mxu0 0.0
        %858 = vmatpush1.msra.mxu0 %v838
        %859 = vmatprep.subr.mxu0 0.0
        %860 = vmatpush1.msra.mxu0 %v839
        %861 = vmatprep.subr.mxu0 0.0
        %862 = vmatpush1.msra.mxu0 %v840
        %863 = vmatprep.subr.mxu0 0.0
        %864 = vmatpush1.msra.mxu0 %v841
        %865 = vmatprep.subr.mxu0 0.0
        %866 = vmatpush1.msra.mxu0 %v842
        %867 = vmatprep.subr.mxu0 0.0
        %868 = vmatpush1.msra.mxu0 %v843
        %869 = vmatprep.subr.mxu0 0.0
        %870 = vmatpush1.msra.mxu0 %v844
        %871 = vmatprep.subr.mxu0 0.0
        %872 = vmatpush1.msra.mxu0 %v845
        %873 = vmatprep.subr.mxu0 0.0
        %874 = vmatpush1.msra.mxu0 %v846
        %875 = vmatprep.subr.mxu0 0.0
        %876 = vmatpush1.msra.mxu0 %v847
        %877 = vmatprep.subr.mxu0 0.0
        %878 = vmatpush1.msra.mxu0 %v848
        %879 = vmatprep.subr.mxu0 0.0
        %880 = vmatpush1.msra.mxu0 %v849
        %881 = vmatprep.subr.mxu0 0.0
        %882 = vmatpush1.msra.mxu0 %v850
        %883 = vmatprep.subr.mxu0 0.0
        %884 = vmatpush1.msra.mxu0 0.0
        %885 = vmatprep.subr.mxu0 0.0
        %886 = vmatpush1.msra.mxu0 0.0
        %887 = vmatprep.subr.mxu0 0.0
        %888 = vmatpush1.msra.mxu0 0.0
        %889 = vmatprep.subr.mxu0 0.0
        %890 = vmatpush1.msra.mxu0 0.0
        %891 = vmatprep.subr.mxu0 0.0
        %892 = vmatpush1.msra.mxu0 0.0
        %893 = vmatprep.subr.mxu0 0.0
        %894 = vmatpush1.msra.mxu0 0.0
        %895 = vmatprep.subr.mxu0 0.0
        %896 = vmatpush1.msra.mxu0 0.0
        %897 = vmatprep.subr.mxu0 0.0
        %898 = vmatpush1.msra.mxu0 0.0
        %899 = vmatprep.subr.mxu0 0.0
        %900 = vmatpush1.msra.mxu0 0.0
        %901 = vmatprep.subr.mxu0 0.0
        %902 = vmatpush1.msra.mxu0 0.0
        %903 = vmatprep.subr.mxu0 0.0
        %904 = vmatpush1.msra.mxu0 0.0
        %905 = vmatprep.subr.mxu0 0.0
        %906 = vmatpush1.msra.mxu0 0.0
        %907 = vmatprep.subr.mxu0 0.0
        %908 = vmatpush1.msra.mxu0 0.0
        %909 = vmatprep.subr.mxu0 0.0
        %910 = vmatpush1.msra.mxu0 0.0
        %911 = vmatprep.subr.mxu0 0.0
        %912 = vmatpush1.msra.mxu0 0.0
        %913 = vmatprep.subr.mxu0 0.0
        %914 = vmatpush1.msra.mxu0 0.0
        %915 = vmatprep.mubr.f32.mxu0 0.0
        %916 = vmatmul.mubr.f32.gmra.mrb[0].mxu0 %v833
        %v917 = vpop.f32.mrb[0].mxu0
        %v918 = vadd.f32 0.0, %v917
        %v919 = vpop.f32.mrb[0].mxu0
        %920 = vmatprep.mubr.f32.mxu0 0.0
        %921 = vmatmul.mubr.f32.gmra.mrb[0].mxu0 %v834
        %v922 = vpop.f32.mrb[0].mxu0
        %v923 = vadd.f32 0.0, %v922
        %v924 = vpop.f32.mrb[0].mxu0
        %925 = vdwg.mxu0
        %s926 = scalar_lea.vmem [#allocation8], 128
        %v927 = vld [vmem:[%s926] sm:$0xff]
        %v928 = vld [vmem:[%s926 + $0x8] sm:$0xff]
        %v929 = vld [vmem:[%s926 + $0x10] sm:$0xff]
        %v930 = vld [vmem:[%s926 + $0x18] sm:$0xff]
        %v931 = vld [vmem:[%s926 + $0x20] sm:$0xff]
        %v932 = vld [vmem:[%s926 + $0x28] sm:$0xff]
        %v933 = vld [vmem:[%s926 + $0x30] sm:$0xff]
        %v934 = vld [vmem:[%s926 + $0x38] sm:$0xff]
        %v935 = vld [vmem:[%s926 + $0x40] sm:$0xff]
        %v936 = vld [vmem:[%s926 + $0x48] sm:$0xff]
        %v937 = vld [vmem:[%s926 + $0x50] sm:$0xff]
        %v938 = vld [vmem:[%s926 + $0x58] sm:$0xff]
        %v939 = vld [vmem:[%s926 + $0x60] sm:$0xff]
        %v940 = vld [vmem:[%s926 + $0x68] sm:$0xff]
        %v941 = vld [vmem:[%s926 + $0x70] sm:$0xff]
        %v942 = vld [vmem:[%s926 + $0x78] sm:$0xff]
        %s943 = scalar_lea.vmem [#allocation8], 256
        %v944 = vld [vmem:[%s943] sm:$0xff]
        %v945 = vld [vmem:[%s943 + $0x8] sm:$0xff]
        %v946 = vld [vmem:[%s943 + $0x10] sm:$0xff]
        %v947 = vld [vmem:[%s943 + $0x18] sm:$0xff]
        %v948 = vld [vmem:[%s943 + $0x20] sm:$0xff]
        %v949 = vld [vmem:[%s943 + $0x28] sm:$0xff]
        %v950 = vld [vmem:[%s943 + $0x30] sm:$0xff]
        %v951 = vld [vmem:[%s943 + $0x38] sm:$0xff]
        %v952 = vld [vmem:[%s943 + $0x40] sm:$0xff]
        %v953 = vld [vmem:[%s943 + $0x48] sm:$0xff]
        %v954 = vld [vmem:[%s943 + $0x50] sm:$0xff]
        %v955 = vld [vmem:[%s943 + $0x58] sm:$0xff]
        %v956 = vld [vmem:[%s943 + $0x60] sm:$0xff]
        %v957 = vld [vmem:[%s943 + $0x68] sm:$0xff]
        %v958 = vld [vmem:[%s943 + $0x70] sm:$0xff]
        %v959 = vld [vmem:[%s943 + $0x78] sm:$0xff]
        %960 = vmatprep.subr.mxu0 0.0
        %961 = vmatpush1.msra.mxu0 %v944
        %962 = vmatprep.subr.mxu0 0.0
        %963 = vmatpush1.msra.mxu0 %v945
        %964 = vmatprep.subr.mxu0 0.0
        %965 = vmatpush1.msra.mxu0 %v946
        %966 = vmatprep.subr.mxu0 0.0
        %967 = vmatpush1.msra.mxu0 %v947
        %968 = vmatprep.subr.mxu0 0.0
        %969 = vmatpush1.msra.mxu0 %v948
        %970 = vmatprep.subr.mxu0 0.0
        %971 = vmatpush1.msra.mxu0 %v949
        %972 = vmatprep.subr.mxu0 0.0
        %973 = vmatpush1.msra.mxu0 %v950
        %974 = vmatprep.subr.mxu0 0.0
        %975 = vmatpush1.msra.mxu0 %v951
        %976 = vmatprep.subr.mxu0 0.0
        %977 = vmatpush1.msra.mxu0 %v952
        %978 = vmatprep.subr.mxu0 0.0
        %979 = vmatpush1.msra.mxu0 %v953
        %980 = vmatprep.subr.mxu0 0.0
        %981 = vmatpush1.msra.mxu0 %v954
        %982 = vmatprep.subr.mxu0 0.0
        %983 = vmatpush1.msra.mxu0 %v955
        %984 = vmatprep.subr.mxu0 0.0
        %985 = vmatpush1.msra.mxu0 %v956
        %986 = vmatprep.subr.mxu0 0.0
        %987 = vmatpush1.msra.mxu0 %v957
        %988 = vmatprep.subr.mxu0 0.0
        %989 = vmatpush1.msra.mxu0 %v958
        %990 = vmatprep.subr.mxu0 0.0
        %991 = vmatpush1.msra.mxu0 %v959
        %992 = vmatprep.subr.mxu0 0.0
        %993 = vmatpush1.msra.mxu0 0.0
        %994 = vmatprep.subr.mxu0 0.0
        %995 = vmatpush1.msra.mxu0 0.0
        %996 = vmatprep.subr.mxu0 0.0
        %997 = vmatpush1.msra.mxu0 0.0
        %998 = vmatprep.subr.mxu0 0.0
        %999 = vmatpush1.msra.mxu0 0.0
        %1000 = vmatprep.subr.mxu0 0.0
        %1001 = vmatpush1.msra.mxu0 0.0
        %1002 = vmatprep.subr.mxu0 0.0
        %1003 = vmatpush1.msra.mxu0 0.0
        %1004 = vmatprep.subr.mxu0 0.0
        %1005 = vmatpush1.msra.mxu0 0.0
        %1006 = vmatprep.subr.mxu0 0.0
        %1007 = vmatpush1.msra.mxu0 0.0
        %1008 = vmatprep.subr.mxu0 0.0
        %1009 = vmatpush1.msra.mxu0 0.0
        %1010 = vmatprep.subr.mxu0 0.0
        %1011 = vmatpush1.msra.mxu0 0.0
        %1012 = vmatprep.subr.mxu0 0.0
        %1013 = vmatpush1.msra.mxu0 0.0
        %1014 = vmatprep.subr.mxu0 0.0
        %1015 = vmatpush1.msra.mxu0 0.0
        %1016 = vmatprep.subr.mxu0 0.0
        %1017 = vmatpush1.msra.mxu0 0.0
        %1018 = vmatprep.subr.mxu0 0.0
        %1019 = vmatpush1.msra.mxu0 0.0
        %1020 = vmatprep.subr.mxu0 0.0
        %1021 = vmatpush1.msra.mxu0 0.0
        %1022 = vmatprep.subr.mxu0 0.0
        %1023 = vmatpush1.msra.mxu0 0.0
        %1024 = vmatprep.mubr.f32.mxu0 0.0
        %1025 = vmatmul.mubr.f32.gmra.mrb[0].mxu0 %v833
        %v1026 = vpop.f32.mrb[0].mxu0
        %v1027 = vadd.f32 0.0, %v1026
        %v1028 = vpop.f32.mrb[0].mxu0
        %1029 = vmatprep.mubr.f32.mxu0 0.0
        %1030 = vmatmul.mubr.f32.gmra.mrb[0].mxu0 %v834
        %v1031 = vpop.f32.mrb[0].mxu0
        %v1032 = vadd.f32 0.0, %v1031
        %v1033 = vpop.f32.mrb[0].mxu0
        %1034 = vdwg.mxu0
        %1035 = vmatprep.subr.mxu0 0.0
        %1036 = vmatpush1.msra.mxu0 %v918
        %1037 = vmatprep.subr.mxu0 0.0
        %1038 = vmatpush1.msra.mxu0 %v923
        %1039 = vmatprep.subr.mxu0 0.0
        %1040 = vmatpush1.msra.mxu0 0.0
        %1041 = vmatprep.subr.mxu0 0.0
        %1042 = vmatpush1.msra.mxu0 0.0
        %1043 = vmatprep.subr.mxu0 0.0
        %1044 = vmatpush1.msra.mxu0 0.0
        %1045 = vmatprep.subr.mxu0 0.0
        %1046 = vmatpush1.msra.mxu0 0.0
        %1047 = vmatprep.subr.mxu0 0.0
        %1048 = vmatpush1.msra.mxu0 0.0
        %1049 = vmatprep.subr.mxu0 0.0
        %1050 = vmatpush1.msra.mxu0 0.0
        %1051 = vmatprep.subr.mxu0 0.0
        %1052 = vmatpush1.msra.mxu0 0.0
        %1053 = vmatprep.subr.mxu0 0.0
        %1054 = vmatpush1.msra.mxu0 0.0
        %1055 = vmatprep.subr.mxu0 0.0
        %1056 = vmatpush1.msra.mxu0 0.0
        %1057 = vmatprep.subr.mxu0 0.0
        %1058 = vmatpush1.msra.mxu0 0.0
        %1059 = vmatprep.subr.mxu0 0.0
        %1060 = vmatpush1.msra.mxu0 0.0
        %1061 = vmatprep.subr.mxu0 0.0
        %1062 = vmatpush1.msra.mxu0 0.0
        %1063 = vmatprep.subr.mxu0 0.0
        %1064 = vmatpush1.msra.mxu0 0.0
        %1065 = vmatprep.subr.mxu0 0.0
        %1066 = vmatpush1.msra.mxu0 0.0
        %1067 = vmatprep.subr.mxu0 0.0
        %1068 = vmatpush1.msra.mxu0 0.0
        %1069 = vmatprep.subr.mxu0 0.0
        %1070 = vmatpush1.msra.mxu0 0.0
        %1071 = vmatprep.subr.mxu0 0.0
        %1072 = vmatpush1.msra.mxu0 0.0
        %1073 = vmatprep.subr.mxu0 0.0
        %1074 = vmatpush1.msra.mxu0 0.0
        %1075 = vmatprep.subr.mxu0 0.0
        %1076 = vmatpush1.msra.mxu0 0.0
        %1077 = vmatprep.subr.mxu0 0.0
        %1078 = vmatpush1.msra.mxu0 0.0
        %1079 = vmatprep.subr.mxu0 0.0
        %1080 = vmatpush1.msra.mxu0 0.0
        %1081 = vmatprep.subr.mxu0 0.0
        %1082 = vmatpush1.msra.mxu0 0.0
        %1083 = vmatprep.subr.mxu0 0.0
        %1084 = vmatpush1.msra.mxu0 0.0
        %1085 = vmatprep.subr.mxu0 0.0
        %1086 = vmatpush1.msra.mxu0 0.0
        %1087 = vmatprep.subr.mxu0 0.0
        %1088 = vmatpush1.msra.mxu0 0.0
        %1089 = vmatprep.subr.mxu0 0.0
        %1090 = vmatpush1.msra.mxu0 0.0
        %1091 = vmatprep.subr.mxu0 0.0
        %1092 = vmatpush1.msra.mxu0 0.0
        %1093 = vmatprep.subr.mxu0 0.0
        %1094 = vmatpush1.msra.mxu0 0.0
        %1095 = vmatprep.subr.mxu0 0.0
        %1096 = vmatpush1.msra.mxu0 0.0
        %1097 = vmatprep.subr.mxu0 0.0
        %1098 = vmatpush1.msra.mxu0 0.0
        %1099 = vmatprep.mubr.f32.mxu0 0.0
        %1100 = vmatmul.mubr.f32.gmra.mrb[0].mxu0 %v574
        %v1101 = vpop.f32.mrb[0].mxu0
        %v1102 = vadd.f32 0.0, %v1101
        %v1103 = vpop.f32.mrb[0].mxu0
        %1104 = vmatprep.mubr.f32.mxu0 0.0
        %1105 = vmatmul.mubr.f32.gmra.mrb[0].mxu0 %v577
        %v1106 = vpop.f32.mrb[0].mxu0
        %v1107 = vadd.f32 0.0, %v1106
        %v1108 = vpop.f32.mrb[0].mxu0
        %1109 = vdwg.mxu0
        %1110 = vmatprep.subr.mxu0 0.0
        %1111 = vmatpush1.msra.mxu0 %v1027
        %1112 = vmatprep.subr.mxu0 0.0
        %1113 = vmatpush1.msra.mxu0 %v1032
        %1114 = vmatprep.subr.mxu0 0.0
        %1115 = vmatpush1.msra.mxu0 0.0
        %1116 = vmatprep.subr.mxu0 0.0
        %1117 = vmatpush1.msra.mxu0 0.0
        %1118 = vmatprep.subr.mxu0 0.0
        %1119 = vmatpush1.msra.mxu0 0.0
        %1120 = vmatprep.subr.mxu0 0.0
        %1121 = vmatpush1.msra.mxu0 0.0
        %1122 = vmatprep.subr.mxu0 0.0
        %1123 = vmatpush1.msra.mxu0 0.0
        %1124 = vmatprep.subr.mxu0 0.0
        %1125 = vmatpush1.msra.mxu0 0.0
        %1126 = vmatprep.subr.mxu0 0.0
        %1127 = vmatpush1.msra.mxu0 0.0
        %1128 = vmatprep.subr.mxu0 0.0
        %1129 = vmatpush1.msra.mxu0 0.0
        %1130 = vmatprep.subr.mxu0 0.0
        %1131 = vmatpush1.msra.mxu0 0.0
        %1132 = vmatprep.subr.mxu0 0.0
        %1133 = vmatpush1.msra.mxu0 0.0
        %1134 = vmatprep.subr.mxu0 0.0
        %1135 = vmatpush1.msra.mxu0 0.0
        %1136 = vmatprep.subr.mxu0 0.0
        %1137 = vmatpush1.msra.mxu0 0.0
        %1138 = vmatprep.subr.mxu0 0.0
        %1139 = vmatpush1.msra.mxu0 0.0
        %1140 = vmatprep.subr.mxu0 0.0
        %1141 = vmatpush1.msra.mxu0 0.0
        %1142 = vmatprep.subr.mxu0 0.0
        %1143 = vmatpush1.msra.mxu0 0.0
        %1144 = vmatprep.subr.mxu0 0.0
        %1145 = vmatpush1.msra.mxu0 0.0
        %1146 = vmatprep.subr.mxu0 0.0
        %1147 = vmatpush1.msra.mxu0 0.0
        %1148 = vmatprep.subr.mxu0 0.0
        %1149 = vmatpush1.msra.mxu0 0.0
        %1150 = vmatprep.subr.mxu0 0.0
        %1151 = vmatpush1.msra.mxu0 0.0
        %1152 = vmatprep.subr.mxu0 0.0
        %1153 = vmatpush1.msra.mxu0 0.0
        %1154 = vmatprep.subr.mxu0 0.0
        %1155 = vmatpush1.msra.mxu0 0.0
        %1156 = vmatprep.subr.mxu0 0.0
        %1157 = vmatpush1.msra.mxu0 0.0
        %1158 = vmatprep.subr.mxu0 0.0
        %1159 = vmatpush1.msra.mxu0 0.0
        %1160 = vmatprep.subr.mxu0 0.0
        %1161 = vmatpush1.msra.mxu0 0.0
        %1162 = vmatprep.subr.mxu0 0.0
        %1163 = vmatpush1.msra.mxu0 0.0
        %1164 = vmatprep.subr.mxu0 0.0
        %1165 = vmatpush1.msra.mxu0 0.0
        %1166 = vmatprep.subr.mxu0 0.0
        %1167 = vmatpush1.msra.mxu0 0.0
        %1168 = vmatprep.subr.mxu0 0.0
        %1169 = vmatpush1.msra.mxu0 0.0
        %1170 = vmatprep.subr.mxu0 0.0
        %1171 = vmatpush1.msra.mxu0 0.0
        %1172 = vmatprep.subr.mxu0 0.0
        %1173 = vmatpush1.msra.mxu0 0.0
        %1174 = vmatprep.mubr.f32.mxu0 0.0
        %1175 = vmatmul.mubr.f32.gmra.mrb[0].mxu0 %v658
        %v1176 = vpop.f32.mrb[0].mxu0
        %v1177 = vadd.f32 0.0, %v1176
        %v1178 = vpop.f32.mrb[0].mxu0
        %1179 = vmatprep.mubr.f32.mxu0 0.0
        %1180 = vmatmul.mubr.f32.gmra.mrb[0].mxu0 %v661
        %v1181 = vpop.f32.mrb[0].mxu0
        %v1182 = vadd.f32 0.0, %v1181
        %v1183 = vpop.f32.mrb[0].mxu0
        %1184 = vdwg.mxu0
        %1185 = vmatprep.subr.mxu0 0.0
        %1186 = vmatpush1.msra.mxu0 %v927
        %1187 = vmatprep.subr.mxu0 0.0
        %1188 = vmatpush1.msra.mxu0 %v928
        %1189 = vmatprep.subr.mxu0 0.0
        %1190 = vmatpush1.msra.mxu0 %v929
        %1191 = vmatprep.subr.mxu0 0.0
        %1192 = vmatpush1.msra.mxu0 %v930
        %1193 = vmatprep.subr.mxu0 0.0
        %1194 = vmatpush1.msra.mxu0 %v931
        %1195 = vmatprep.subr.mxu0 0.0
        %1196 = vmatpush1.msra.mxu0 %v932
        %1197 = vmatprep.subr.mxu0 0.0
        %1198 = vmatpush1.msra.mxu0 %v933
        %1199 = vmatprep.subr.mxu0 0.0
        %1200 = vmatpush1.msra.mxu0 %v934
        %1201 = vmatprep.subr.mxu0 0.0
        %1202 = vmatpush1.msra.mxu0 %v935
        %1203 = vmatprep.subr.mxu0 0.0
        %1204 = vmatpush1.msra.mxu0 %v936
        %1205 = vmatprep.subr.mxu0 0.0
        %1206 = vmatpush1.msra.mxu0 %v937
        %1207 = vmatprep.subr.mxu0 0.0
        %1208 = vmatpush1.msra.mxu0 %v938
        %1209 = vmatprep.subr.mxu0 0.0
        %1210 = vmatpush1.msra.mxu0 %v939
        %1211 = vmatprep.subr.mxu0 0.0
        %1212 = vmatpush1.msra.mxu0 %v940
        %1213 = vmatprep.subr.mxu0 0.0
        %1214 = vmatpush1.msra.mxu0 %v941
        %1215 = vmatprep.subr.mxu0 0.0
        %1216 = vmatpush1.msra.mxu0 %v942
        %1217 = vmatprep.subr.mxu0 0.0
        %1218 = vmatpush1.msra.mxu0 0.0
        %1219 = vmatprep.subr.mxu0 0.0
        %1220 = vmatpush1.msra.mxu0 0.0
        %1221 = vmatprep.subr.mxu0 0.0
        %1222 = vmatpush1.msra.mxu0 0.0
        %1223 = vmatprep.subr.mxu0 0.0
        %1224 = vmatpush1.msra.mxu0 0.0
        %1225 = vmatprep.subr.mxu0 0.0
        %1226 = vmatpush1.msra.mxu0 0.0
        %1227 = vmatprep.subr.mxu0 0.0
        %1228 = vmatpush1.msra.mxu0 0.0
        %1229 = vmatprep.subr.mxu0 0.0
        %1230 = vmatpush1.msra.mxu0 0.0
        %1231 = vmatprep.subr.mxu0 0.0
        %1232 = vmatpush1.msra.mxu0 0.0
        %1233 = vmatprep.subr.mxu0 0.0
        %1234 = vmatpush1.msra.mxu0 0.0
        %1235 = vmatprep.subr.mxu0 0.0
        %1236 = vmatpush1.msra.mxu0 0.0
        %1237 = vmatprep.subr.mxu0 0.0
        %1238 = vmatpush1.msra.mxu0 0.0
        %1239 = vmatprep.subr.mxu0 0.0
        %1240 = vmatpush1.msra.mxu0 0.0
        %1241 = vmatprep.subr.mxu0 0.0
        %1242 = vmatpush1.msra.mxu0 0.0
        %1243 = vmatprep.subr.mxu0 0.0
        %1244 = vmatpush1.msra.mxu0 0.0
        %1245 = vmatprep.subr.mxu0 0.0
        %1246 = vmatpush1.msra.mxu0 0.0
        %1247 = vmatprep.subr.mxu0 0.0
        %1248 = vmatpush1.msra.mxu0 0.0
        %1249 = vmatprep.mubr.f32.mxu0 0.0
        %1250 = vmatmul.mubr.f32.gmra.mrb[0].mxu0 %v833
        %v1251 = vpop.f32.mrb[0].mxu0
        %v1252 = vadd.f32 %v1102, %v1251
        %v1253 = vpop.f32.mrb[0].mxu0
        %1254 = vmatprep.mubr.f32.mxu0 0.0
        %1255 = vmatmul.mubr.f32.gmra.mrb[0].mxu0 %v834
        %v1256 = vpop.f32.mrb[0].mxu0
        %v1257 = vadd.f32 %v1107, %v1256
        %v1258 = vpop.f32.mrb[0].mxu0
        %1259 = vdwg.mxu0
        %v1260 = vadd.f32 %v1252, %v1177
        %v1261 = vadd.f32 %v1257, %v1182
        %v1262 = vld [vmem:[%s6] sm:$0x1]
        %v1264 = vlaneseq
        %v1265 = vshrl.u32 %v1264, 7
        %v1266 = vsub.s32 0, %v1265
        %v1267 = vrot.slane %v1262, %v1266
        %v1269 = vmul.f32 %v1260, %v1267
        %v1270 = vmul.f32 %v1261, %v1267
        %v1271 = vld [vmem:[%s7] sm:$0x1]
        %v1273 = vlaneseq
        %v1274 = vshrl.u32 %v1273, 7
        %v1275 = vsub.s32 0, %v1274
        %v1276 = vrot.slane %v1271, %v1275
        %v1278 = vadd.f32 %v1269, %v1276
        %v1279 = vadd.f32 %v1270, %v1276
        %v1280 = vadd.f32 %v1278, %v368
        %v1281 = vadd.f32 %v1279, %v369
        %1282 = vst [vmem:[%s367] sm:$0xff] %v1280
        %1283 = vst [vmem:[%s367 + $0x8] sm:$0xff] %v1281
        %s1284 = sand.u32 %s208, 1
        %s1285 = scalar_lea.sflag [#allocation4], %s1284
        %s1286 = sand.u32 %s208, 1
        %s1287 = smul.addr %s1286, 16
        %s1288 = scalar_lea.vmem [#allocation10], %s1287
        // Predicated region
        $region69: #{tpu_custom_call.1} parent=51 // pred_check
          %p1289 = pneg %p218
        $region70: #{tpu_custom_call.1} parent=51 // pred_check_branch
          %1291 = sbr.rel (%p1289) target = $region72
        $region71: #{tpu_custom_call.1} parent=51 // pred_region
          %s1293 = ssub.s32 256, 256
          %1294 = vsyncadd %s1285, %s1293
          %s1295 = smul.addr %s27, 2
          %s1296 = smul.addr %s1295, 128
          %s1297 = scalar_lea.hbm %s8, %s1296
          %s1298 = sshll.u32 %s1288, 4
          %s1299 = int_to_ptr.vmem [resolvable:$true] %s1298
          %1304 = dma.vmem_to_hbm [thread:$0]  %s1299, 256, %s1297, %s1285, 128, 128, 8
        $region72: #{tpu_custom_call.1} parent=51 // pred_fallthru
          _
      $region52: #{tpu_custom_call.1} parent=5 // pred_fallthru
        _
      %p1305 = scmp.le.s32.totalorder 2, %s22
      // Predicated region
      $region73: #{tpu_custom_call.1} parent=5 // pred_check
        %p1306 = pneg %p1305
      $region74: #{tpu_custom_call.1} parent=5 // pred_check_branch
        %1308 = sbr.rel (%p1306) target = $region76
      $region75: #{tpu_custom_call.1} parent=5 // pred_region
        %s1309 = ssub.s32 %s22, 2
        // Predicated region
        $region77: #{tpu_custom_call.1} parent=75 // pred_check
          %p1310 = pneg %p224
        $region78: #{tpu_custom_call.1} parent=75 // pred_check_branch
          %1312 = sbr.rel (%p1310) target = $region80
        $region79: #{tpu_custom_call.1} parent=75 // pred_region
          %s1313 = sand.u32 %s209, 1
          %s1314 = scalar_lea.sflag [#allocation4], %s1313
          %s1315 = sand.u32 %s209, 1
          %s1316 = smul.addr %s1315, 16
          %s1317 = scalar_lea.vmem [#allocation10], %s1316
          %1318 = dma.done %s1314, 256
        $region80: #{tpu_custom_call.1} parent=75 // pred_fallthru
          _
      $region76: #{tpu_custom_call.1} parent=5 // pred_fallthru
        _
    $region6: #{tpu_custom_call.1} parent=1 // loop_footer
      %s26 = sadd.s32 1, %s22
    $region7: #{tpu_custom_call.1} parent=1 // loop_footer_branch
      %21 = sbr.rel target = $region3
    $region8: #{tpu_custom_call.1} parent=1 // loop_exit
      _
    %1319 = vsyncpa [#allocation3], 1
    %s1320 = scalar_lea.sflag [#allocation3], 1
    %1321 = vsyncpa %s1320, 1
    %1322 = vsyncpa [#allocation6], 1
    %1323 = vsyncpa [#allocation9], 1
    %1324 = vsyncpa [#allocation4], 1
    %s1325 = scalar_lea.sflag [#allocation4], 1
    %1326 = vsyncpa %s1325, 1

</llo_original>
